<compile_context>
chip_gen: v6e
topology: v6e:2x2x1
jax: 0.10.0
libtpu: 0.0.40
codegen_flags: <defaults>
</compile_context>

<pallas_src>
import functools

import numpy as np
import jax
import jax.numpy as jnp
from jax.experimental import pallas as pl
from jax.experimental.pallas import tpu as pltpu

N_LAYERS = 3
BN_EPS = 1e-5


def edge_mask_net_kernel(
    src_ref, dst_ref,                                # SMEM edge indices [E]
    x_ref, a_ref, eattr_ref,                         # data (bf16)
    wn_ref, bn_ref,                                  # node_lin
    wi_ref, wr_ref, ba_ref, gamma_ref, beta_ref,     # ARMA W_init/W_root/bias + BN affine
    w1_ref, w2_ref, w3_ref, bfold_ref,               # folded edge path -> mlp.lin1
    wm2_ref, bm2_ref,                                # mlp.lin2 (as row) + bias
    out_ref,                                         # [1, E] lane-dense output
    p1_scr, p2_scr, epre_scr):                       # VMEM scratch
  f32 = jnp.float32
  bf16 = jnp.bfloat16
  dot = functools.partial(jnp.dot, preferred_element_type=f32)

  n_nodes, hid = p1_scr.shape
  n_edges = epre_scr.shape[0]
  inv_n = 1.0 / n_nodes

  # x = relu(node_lin(flatten(x)))   (bf16 matmul, f32 accumulate / elementwise)
  h = jnp.maximum(dot(x_ref[...], wn_ref[...]) + bn_ref[...], 0.0)
  a = a_ref[...]                                     # [N, N] normalized adjacency (bf16)

  # for conv, bn in zip(convs, batch_norms): x = bn(relu(conv(x, edge_index)))
  for l in range(N_LAYERS):
    hb = h.astype(bf16)
    hwi = dot(hb, wi_ref[l])                         # h @ W_init   [N, hid] f32
    hwr = dot(hb, wr_ref[l])                         # h @ W_root   [N, hid] f32
    prop = dot(a, hwi.astype(bf16))                  # A_hat @ (h @ W_init)
    # ARMAConv applies ReLU internally; the outer F.relu is idempotent on top of it.
    h = jnp.maximum(prop + hwr + ba_ref[l], 0.0)
    # BatchNorm1d, training mode, two-pass batch stats (biased variance).
    mean = jnp.sum(h, axis=0, keepdims=True) * inv_n
    d = h - mean
    var = jnp.sum(d * d, axis=0, keepdims=True) * inv_n
    scale = gamma_ref[l] * jax.lax.rsqrt(var + BN_EPS)
    h = d * scale + beta_ref[l]

  # Node-level projections of the folded edge_lin1 -> mlp.lin1 weights
  # (2*N*hid^2 FLOPs instead of 2*E*hid^2 on the edge path).
  hb = h.astype(bf16)
  p1_scr[...] = dot(hb, w1_ref[...])                 # contribution of the src node
  p2_scr[...] = dot(hb, w2_ref[...])                 # contribution of the dst node

  # Per-edge gather: scalar index reads first, then one row add + one row store.
  # Fully unrolled so the LLO scheduler can interleave sld / vld / vst across edges.
  def gather_row(e, carry):
    s = src_ref[e]
    d_ = dst_ref[e]
    epre_scr[pl.ds(e, 1), :] = (p1_scr[pl.ds(s, 1), :] +
                                p2_scr[pl.ds(d_, 1), :])
    return carry

  jax.lax.fori_loop(0, n_edges, gather_row, 0, unroll=True)

  # Folded mlp.lin1 (+ edge_lin1/edge_lin2) -> tanh, then lin2 as a lane-dense (1, E).
  hmid = jnp.tanh(epre_scr[...] + dot(eattr_ref[...], w3_ref[...]) + bfold_ref[...])
  out = jax.lax.dot_general(wm2_ref[...], hmid.astype(bf16),
                            (((1,), (1,)), ((), ())),
                            preferred_element_type=f32)        # [1, E]
  out_ref[...] = out + bm2_ref[...]


def edge_mask_net(x, edge_index, edge_attr, params):
  """x: [N, ...] node features, edge_index: [2, E] int32, edge_attr: [E, e_in]."""
  (wn, bn, wi, wr, ba, gamma, beta,
   we1, be1, we2, be2, wm1, bm1, wm2, bm2) = params

  f32 = jnp.float32
  bf16 = jnp.bfloat16

  n = x.shape[0]
  hid = wn.shape[1]
  x_flat = x.reshape(n, -1)                           # torch.flatten(x, 1, -1)
  e_cnt = edge_index.shape[1]
  row = edge_index[0].astype(jnp.int32)
  col = edge_index[1].astype(jnp.int32)

  # gcn_norm (add_self_loops=False, flow source->target): index/scatter glue only.
  deg = jnp.zeros((n,), f32).at[col].add(1.0)
  dinv = jnp.where(deg > 0, jax.lax.rsqrt(jnp.maximum(deg, 1.0)), 0.0)
  norm = dinv[row] * dinv[col]
  a_hat = jnp.zeros((n, n), f32).at[col, row].add(norm)

  # Fold edge_lin1 / edge_lin2 into mlp.lin1 (f32 products, then bf16 for the MXU):
  #   mlp.lin1(cat(edge_lin1(cat(h_src,h_dst)), edge_lin2(eattr)))
  #     = h_src @ W1 + h_dst @ W2 + eattr @ W3 + b'
  wm1a = wm1[:hid]
  wm1b = wm1[hid:]
  w1 = we1[:hid] @ wm1a
  w2 = we1[hid:] @ wm1a
  w3 = we2 @ wm1b
  bfold = be1 @ wm1a + be2 @ wm1b + bm1
  wm2_row = wm2.reshape(1, hid)

  inputs = (
      row, col,
      x_flat.astype(bf16), a_hat.astype(bf16), edge_attr.astype(bf16),
      wn.astype(bf16), bn.astype(f32),
      wi.astype(bf16), wr.astype(bf16), ba.astype(f32),
      gamma.astype(f32), beta.astype(f32),
      w1.astype(bf16), w2.astype(bf16), w3.astype(bf16), bfold.astype(f32),
      wm2_row.astype(bf16), bm2.astype(f32),
  )

  smem = pl.BlockSpec(memory_space=pltpu.MemorySpace.SMEM)
  vmem = pl.BlockSpec(memory_space=pltpu.MemorySpace.VMEM)
  in_specs = [smem, smem] + [vmem] * (len(inputs) - 2)

  scratch_shapes = [
      pltpu.VMEM((n, hid), f32),            # p1 = h @ W1 (src-side projection)
      pltpu.VMEM((n, hid), f32),            # p2 = h @ W2 (dst-side projection)
      pltpu.VMEM((e_cnt, hid), f32),        # per-edge pre-activation rows
  ]

  # VMEM budget: 2x(operands + scratch) for compiler temporaries, capped below
  # v7x's 64 MiB physical VMEM (v5e/v6e have 128 MiB, so the cap is safe everywhere).
  def nbytes(a):
    return int(np.prod(a.shape)) * jnp.dtype(a.dtype).itemsize
  operand_bytes = sum(nbytes(a) for a in inputs)
  scratch_bytes = (2 * n * hid + e_cnt * hid) * 4
  vmem_limit = int(min(48 * 1024 * 1024,
                       max(4 * 1024 * 1024, 2 * (operand_bytes + scratch_bytes))))

  out = pl.pallas_call(
      edge_mask_net_kernel,
      out_shape=jax.ShapeDtypeStruct((1, e_cnt), f32),
      in_specs=in_specs,
      out_specs=vmem,
      scratch_shapes=scratch_shapes,
      compiler_params=pltpu.CompilerParams(vmem_limit_bytes=vmem_limit),
  )(*inputs)
  return out.reshape(e_cnt, 1)


def _xavier(key, shape):
  fan_in, fan_out = shape[0], shape[1]
  bound = float(np.sqrt(6.0 / (fan_in + fan_out)))
  return jax.random.uniform(key, shape, jnp.float32, -bound, bound)


if __name__ == "__main__":
  key = jax.random.PRNGKey(0)
  N, side, e_in, hid = 16, 4, 4, 32
  n_in = side * side

  ks = jax.random.split(key, 16)
  x = jax.random.normal(ks[0], (N, side, side), jnp.float32)       # flattened to [N, 16]

  # deterministic bidirectional ring graph
  src = np.concatenate([np.arange(N), np.arange(N)])
  dst = np.concatenate([(np.arange(N) + 1) % N, (np.arange(N) - 1) % N])
  edge_index = jnp.asarray(np.stack([src, dst]), jnp.int32)        # [2, E], E = 32
  E = edge_index.shape[1]
  edge_attr = jax.random.normal(ks[1], (E, e_in), jnp.float32)

  params = (
      _xavier(ks[2], (n_in, hid)),                                  # node_lin W
      0.01 * jax.random.normal(ks[3], (1, hid), jnp.float32),       # node_lin b
      jnp.stack([_xavier(k, (hid, hid)) for k in jax.random.split(ks[4], N_LAYERS)]),  # ARMA W_init [L,hid,hid]
      jnp.stack([_xavier(k, (hid, hid)) for k in jax.random.split(ks[5], N_LAYERS)]),  # ARMA W_root [L,hid,hid]
      jnp.zeros((N_LAYERS, 1, hid), jnp.float32),                   # ARMA bias
      jnp.ones((N_LAYERS, 1, hid), jnp.float32),                    # BN gamma
      jnp.zeros((N_LAYERS, 1, hid), jnp.float32),                   # BN beta
      _xavier(ks[6], (2 * hid, hid)),                               # edge_lin1 W
      0.01 * jax.random.normal(ks[7], (1, hid), jnp.float32),       # edge_lin1 b
      _xavier(ks[8], (e_in, hid)),                                  # edge_lin2 W
      0.01 * jax.random.normal(ks[9], (1, hid), jnp.float32),       # edge_lin2 b
      _xavier(ks[10], (2 * hid, hid)),                              # mlp lin1 W
      0.01 * jax.random.normal(ks[11], (1, hid), jnp.float32),      # mlp lin1 b
      _xavier(ks[12], (hid, 1)),                                    # mlp lin2 W
      0.01 * jax.random.normal(ks[13], (1, 1), jnp.float32),        # mlp lin2 b
  )

  out = edge_mask_net(x, edge_index, edge_attr, params)
  jax.block_until_ready(out)
  assert out.shape == (E, 1) and out.dtype == jnp.float32
  print("KERNEL_OK")
</pallas_src>

<mosaic_0001>
module attributes {stable_mosaic.version = 11 : i64} {
  func.func @edge_mask_net_kernel(%arg0: memref<32xi32, #tpu.memory_space<smem>>, %arg1: memref<32xi32, #tpu.memory_space<smem>>, %arg2: memref<16x16xbf16, #tpu.memory_space<vmem>>, %arg3: memref<16x16xbf16, #tpu.memory_space<vmem>>, %arg4: memref<32x4xbf16, #tpu.memory_space<vmem>>, %arg5: memref<16x32xbf16, #tpu.memory_space<vmem>>, %arg6: memref<1x32xf32, #tpu.memory_space<vmem>>, %arg7: memref<3x32x32xbf16, #tpu.memory_space<vmem>>, %arg8: memref<3x32x32xbf16, #tpu.memory_space<vmem>>, %arg9: memref<3x1x32xf32, #tpu.memory_space<vmem>>, %arg10: memref<3x1x32xf32, #tpu.memory_space<vmem>>, %arg11: memref<3x1x32xf32, #tpu.memory_space<vmem>>, %arg12: memref<32x32xbf16, #tpu.memory_space<vmem>>, %arg13: memref<32x32xbf16, #tpu.memory_space<vmem>>, %arg14: memref<4x32xbf16, #tpu.memory_space<vmem>>, %arg15: memref<1x32xf32, #tpu.memory_space<vmem>>, %arg16: memref<1x32xbf16, #tpu.memory_space<vmem>>, %arg17: memref<1x1xf32, #tpu.memory_space<vmem>>, %arg18: memref<1x32xf32, #tpu.memory_space<vmem>>, %arg19: memref<16x32xf32, #tpu.memory_space<vmem>>, %arg20: memref<16x32xf32, #tpu.memory_space<vmem>>, %arg21: memref<32x32xf32, #tpu.memory_space<vmem>>) attributes {dimension_semantics = [], scalar_prefetch = 0 : i64, scratch_operands = 3 : i64, tpu.core_type = #tpu.core_type<tc>} {
    %c0 = arith.constant 0 : index
    %c0_0 = arith.constant 0 : index
    %0 = vector.load %arg2[%c0, %c0_0] : memref<16x16xbf16, #tpu.memory_space<vmem>>, vector<16x16xbf16>
    %c0_1 = arith.constant 0 : index
    %c0_2 = arith.constant 0 : index
    %1 = vector.load %arg5[%c0_1, %c0_2] : memref<16x32xbf16, #tpu.memory_space<vmem>>, vector<16x32xbf16>
    %cst = arith.constant dense<0.000000e+00> : vector<16x32xf32>
    %2 = tpu.matmul %0, %1, %cst {dimension_numbers = #tpu.dot_dimension_numbers<[1], [0], [0], [1], [0, 0, 1, 1], [], []>} : vector<16x16xbf16>, vector<16x32xbf16>, vector<16x32xf32> -> vector<16x32xf32>
    %c0_3 = arith.constant 0 : index
    %c0_4 = arith.constant 0 : index
    %3 = vector.load %arg6[%c0_3, %c0_4] : memref<1x32xf32, #tpu.memory_space<vmem>>, vector<1x32xf32>
    %4 = vector.broadcast %3 : vector<1x32xf32> to vector<16x32xf32>
    %5 = arith.addf %2, %4 : vector<16x32xf32>
    %cst_5 = arith.constant 0.000000e+00 : f32
    %6 = vector.broadcast %cst_5 : f32 to vector<16x32xf32>
    %7 = arith.maximumf %5, %6 : vector<16x32xf32>
    %c0_6 = arith.constant 0 : index
    %c0_7 = arith.constant 0 : index
    %8 = vector.load %arg3[%c0_6, %c0_7] : memref<16x16xbf16, #tpu.memory_space<vmem>>, vector<16x16xbf16>
    %9 = arith.truncf %7 : vector<16x32xf32> to vector<16x32xbf16>
    %c0_8 = arith.constant 0 : index
    %c0_9 = arith.constant 0 : index
    %c0_10 = arith.constant 0 : index
    %10 = vector.load %arg7[%c0_8, %c0_9, %c0_10] : memref<3x32x32xbf16, #tpu.memory_space<vmem>>, vector<1x32x32xbf16>
    %11 = vector.shape_cast %10 : vector<1x32x32xbf16> to vector<32x32xbf16>
    %cst_11 = arith.constant dense<0.000000e+00> : vector<16x32xf32>
    %12 = tpu.matmul %9, %11, %cst_11 {dimension_numbers = #tpu.dot_dimension_numbers<[1], [0], [0], [1], [0, 0, 1, 1], [], []>} : vector<16x32xbf16>, vector<32x32xbf16>, vector<16x32xf32> -> vector<16x32xf32>
    %c0_12 = arith.constant 0 : index
    %c0_13 = arith.constant 0 : index
    %c0_14 = arith.constant 0 : index
    %13 = vector.load %arg8[%c0_12, %c0_13, %c0_14] : memref<3x32x32xbf16, #tpu.memory_space<vmem>>, vector<1x32x32xbf16>
    %14 = vector.shape_cast %13 : vector<1x32x32xbf16> to vector<32x32xbf16>
    %cst_15 = arith.constant dense<0.000000e+00> : vector<16x32xf32>
    %15 = tpu.matmul %9, %14, %cst_15 {dimension_numbers = #tpu.dot_dimension_numbers<[1], [0], [0], [1], [0, 0, 1, 1], [], []>} : vector<16x32xbf16>, vector<32x32xbf16>, vector<16x32xf32> -> vector<16x32xf32>
    %16 = arith.truncf %12 : vector<16x32xf32> to vector<16x32xbf16>
    %cst_16 = arith.constant dense<0.000000e+00> : vector<16x32xf32>
    %17 = tpu.matmul %8, %16, %cst_16 {dimension_numbers = #tpu.dot_dimension_numbers<[1], [0], [0], [1], [0, 0, 1, 1], [], []>} : vector<16x16xbf16>, vector<16x32xbf16>, vector<16x32xf32> -> vector<16x32xf32>
    %18 = arith.addf %17, %15 : vector<16x32xf32>
    %c0_17 = arith.constant 0 : index
    %c0_18 = arith.constant 0 : index
    %c0_19 = arith.constant 0 : index
    %19 = vector.load %arg9[%c0_17, %c0_18, %c0_19] : memref<3x1x32xf32, #tpu.memory_space<vmem>>, vector<1x1x32xf32>
    %20 = vector.shape_cast %19 : vector<1x1x32xf32> to vector<1x32xf32>
    %21 = vector.broadcast %20 : vector<1x32xf32> to vector<16x32xf32>
    %22 = arith.addf %18, %21 : vector<16x32xf32>
    %cst_20 = arith.constant 0.000000e+00 : f32
    %23 = vector.broadcast %cst_20 : f32 to vector<16x32xf32>
    %24 = arith.maximumf %22, %23 : vector<16x32xf32>
    %cst_21 = arith.constant dense<0.000000e+00> : vector<32xf32>
    %25 = vector.multi_reduction <add>, %24, %cst_21 [0] : vector<16x32xf32> to vector<32xf32>
    %26 = vector.shape_cast %25 : vector<32xf32> to vector<1x32xf32>
    %cst_22 = arith.constant 6.250000e-02 : f32
    %27 = vector.broadcast %cst_22 : f32 to vector<1x32xf32>
    %28 = arith.mulf %26, %27 : vector<1x32xf32>
    %29 = vector.broadcast %28 : vector<1x32xf32> to vector<16x32xf32>
    %30 = arith.subf %24, %29 : vector<16x32xf32>
    %31 = arith.mulf %30, %30 : vector<16x32xf32>
    %cst_23 = arith.constant dense<0.000000e+00> : vector<32xf32>
    %32 = vector.multi_reduction <add>, %31, %cst_23 [0] : vector<16x32xf32> to vector<32xf32>
    %33 = vector.shape_cast %32 : vector<32xf32> to vector<1x32xf32>
    %cst_24 = arith.constant 6.250000e-02 : f32
    %34 = vector.broadcast %cst_24 : f32 to vector<1x32xf32>
    %35 = arith.mulf %33, %34 : vector<1x32xf32>
    %c0_25 = arith.constant 0 : index
    %c0_26 = arith.constant 0 : index
    %c0_27 = arith.constant 0 : index
    %36 = vector.load %arg10[%c0_25, %c0_26, %c0_27] : memref<3x1x32xf32, #tpu.memory_space<vmem>>, vector<1x1x32xf32>
    %37 = vector.shape_cast %36 : vector<1x1x32xf32> to vector<1x32xf32>
    %cst_28 = arith.constant 9.99999974E-6 : f32
    %38 = vector.broadcast %cst_28 : f32 to vector<1x32xf32>
    %39 = arith.addf %35, %38 : vector<1x32xf32>
    %40 = math.rsqrt %39 : vector<1x32xf32>
    %41 = arith.mulf %37, %40 : vector<1x32xf32>
    %42 = vector.broadcast %41 : vector<1x32xf32> to vector<16x32xf32>
    %43 = arith.mulf %30, %42 : vector<16x32xf32>
    %c0_29 = arith.constant 0 : index
    %c0_30 = arith.constant 0 : index
    %c0_31 = arith.constant 0 : index
    %44 = vector.load %arg11[%c0_29, %c0_30, %c0_31] : memref<3x1x32xf32, #tpu.memory_space<vmem>>, vector<1x1x32xf32>
    %45 = vector.shape_cast %44 : vector<1x1x32xf32> to vector<1x32xf32>
    %46 = vector.broadcast %45 : vector<1x32xf32> to vector<16x32xf32>
    %47 = arith.addf %43, %46 : vector<16x32xf32>
    %48 = arith.truncf %47 : vector<16x32xf32> to vector<16x32xbf16>
    %c1 = arith.constant 1 : index
    %c0_32 = arith.constant 0 : index
    %c0_33 = arith.constant 0 : index
    %49 = vector.load %arg7[%c1, %c0_32, %c0_33] : memref<3x32x32xbf16, #tpu.memory_space<vmem>>, vector<1x32x32xbf16>
    %50 = vector.shape_cast %49 : vector<1x32x32xbf16> to vector<32x32xbf16>
    %cst_34 = arith.constant dense<0.000000e+00> : vector<16x32xf32>
    %51 = tpu.matmul %48, %50, %cst_34 {dimension_numbers = #tpu.dot_dimension_numbers<[1], [0], [0], [1], [0, 0, 1, 1], [], []>} : vector<16x32xbf16>, vector<32x32xbf16>, vector<16x32xf32> -> vector<16x32xf32>
    %c1_35 = arith.constant 1 : index
    %c0_36 = arith.constant 0 : index
    %c0_37 = arith.constant 0 : index
    %52 = vector.load %arg8[%c1_35, %c0_36, %c0_37] : memref<3x32x32xbf16, #tpu.memory_space<vmem>>, vector<1x32x32xbf16>
    %53 = vector.shape_cast %52 : vector<1x32x32xbf16> to vector<32x32xbf16>
    %cst_38 = arith.constant dense<0.000000e+00> : vector<16x32xf32>
    %54 = tpu.matmul %48, %53, %cst_38 {dimension_numbers = #tpu.dot_dimension_numbers<[1], [0], [0], [1], [0, 0, 1, 1], [], []>} : vector<16x32xbf16>, vector<32x32xbf16>, vector<16x32xf32> -> vector<16x32xf32>
    %55 = arith.truncf %51 : vector<16x32xf32> to vector<16x32xbf16>
    %cst_39 = arith.constant dense<0.000000e+00> : vector<16x32xf32>
    %56 = tpu.matmul %8, %55, %cst_39 {dimension_numbers = #tpu.dot_dimension_numbers<[1], [0], [0], [1], [0, 0, 1, 1], [], []>} : vector<16x16xbf16>, vector<16x32xbf16>, vector<16x32xf32> -> vector<16x32xf32>
    %57 = arith.addf %56, %54 : vector<16x32xf32>
    %c1_40 = arith.constant 1 : index
    %c0_41 = arith.constant 0 : index
    %c0_42 = arith.constant 0 : index
    %58 = vector.load %arg9[%c1_40, %c0_41, %c0_42] : memref<3x1x32xf32, #tpu.memory_space<vmem>>, vector<1x1x32xf32>
    %59 = vector.shape_cast %58 : vector<1x1x32xf32> to vector<1x32xf32>
    %60 = vector.broadcast %59 : vector<1x32xf32> to vector<16x32xf32>
    %61 = arith.addf %57, %60 : vector<16x32xf32>
    %cst_43 = arith.constant 0.000000e+00 : f32
    %62 = vector.broadcast %cst_43 : f32 to vector<16x32xf32>
    %63 = arith.maximumf %61, %62 : vector<16x32xf32>
    %cst_44 = arith.constant dense<0.000000e+00> : vector<32xf32>
    %64 = vector.multi_reduction <add>, %63, %cst_44 [0] : vector<16x32xf32> to vector<32xf32>
    %65 = vector.shape_cast %64 : vector<32xf32> to vector<1x32xf32>
    %cst_45 = arith.constant 6.250000e-02 : f32
    %66 = vector.broadcast %cst_45 : f32 to vector<1x32xf32>
    %67 = arith.mulf %65, %66 : vector<1x32xf32>
    %68 = vector.broadcast %67 : vector<1x32xf32> to vector<16x32xf32>
    %69 = arith.subf %63, %68 : vector<16x32xf32>
    %70 = arith.mulf %69, %69 : vector<16x32xf32>
    %cst_46 = arith.constant dense<0.000000e+00> : vector<32xf32>
    %71 = vector.multi_reduction <add>, %70, %cst_46 [0] : vector<16x32xf32> to vector<32xf32>
    %72 = vector.shape_cast %71 : vector<32xf32> to vector<1x32xf32>
    %cst_47 = arith.constant 6.250000e-02 : f32
    %73 = vector.broadcast %cst_47 : f32 to vector<1x32xf32>
    %74 = arith.mulf %72, %73 : vector<1x32xf32>
    %c1_48 = arith.constant 1 : index
    %c0_49 = arith.constant 0 : index
    %c0_50 = arith.constant 0 : index
    %75 = vector.load %arg10[%c1_48, %c0_49, %c0_50] : memref<3x1x32xf32, #tpu.memory_space<vmem>>, vector<1x1x32xf32>
    %76 = vector.shape_cast %75 : vector<1x1x32xf32> to vector<1x32xf32>
    %cst_51 = arith.constant 9.99999974E-6 : f32
    %77 = vector.broadcast %cst_51 : f32 to vector<1x32xf32>
    %78 = arith.addf %74, %77 : vector<1x32xf32>
    %79 = math.rsqrt %78 : vector<1x32xf32>
    %80 = arith.mulf %76, %79 : vector<1x32xf32>
    %81 = vector.broadcast %80 : vector<1x32xf32> to vector<16x32xf32>
    %82 = arith.mulf %69, %81 : vector<16x32xf32>
    %c1_52 = arith.constant 1 : index
    %c0_53 = arith.constant 0 : index
    %c0_54 = arith.constant 0 : index
    %83 = vector.load %arg11[%c1_52, %c0_53, %c0_54] : memref<3x1x32xf32, #tpu.memory_space<vmem>>, vector<1x1x32xf32>
    %84 = vector.shape_cast %83 : vector<1x1x32xf32> to vector<1x32xf32>
    %85 = vector.broadcast %84 : vector<1x32xf32> to vector<16x32xf32>
    %86 = arith.addf %82, %85 : vector<16x32xf32>
    %87 = arith.truncf %86 : vector<16x32xf32> to vector<16x32xbf16>
    %c2 = arith.constant 2 : index
    %c0_55 = arith.constant 0 : index
    %c0_56 = arith.constant 0 : index
    %88 = vector.load %arg7[%c2, %c0_55, %c0_56] : memref<3x32x32xbf16, #tpu.memory_space<vmem>>, vector<1x32x32xbf16>
    %89 = vector.shape_cast %88 : vector<1x32x32xbf16> to vector<32x32xbf16>
    %cst_57 = arith.constant dense<0.000000e+00> : vector<16x32xf32>
    %90 = tpu.matmul %87, %89, %cst_57 {dimension_numbers = #tpu.dot_dimension_numbers<[1], [0], [0], [1], [0, 0, 1, 1], [], []>} : vector<16x32xbf16>, vector<32x32xbf16>, vector<16x32xf32> -> vector<16x32xf32>
    %c2_58 = arith.constant 2 : index
    %c0_59 = arith.constant 0 : index
    %c0_60 = arith.constant 0 : index
    %91 = vector.load %arg8[%c2_58, %c0_59, %c0_60] : memref<3x32x32xbf16, #tpu.memory_space<vmem>>, vector<1x32x32xbf16>
    %92 = vector.shape_cast %91 : vector<1x32x32xbf16> to vector<32x32xbf16>
    %cst_61 = arith.constant dense<0.000000e+00> : vector<16x32xf32>
    %93 = tpu.matmul %87, %92, %cst_61 {dimension_numbers = #tpu.dot_dimension_numbers<[1], [0], [0], [1], [0, 0, 1, 1], [], []>} : vector<16x32xbf16>, vector<32x32xbf16>, vector<16x32xf32> -> vector<16x32xf32>
    %94 = arith.truncf %90 : vector<16x32xf32> to vector<16x32xbf16>
    %cst_62 = arith.constant dense<0.000000e+00> : vector<16x32xf32>
    %95 = tpu.matmul %8, %94, %cst_62 {dimension_numbers = #tpu.dot_dimension_numbers<[1], [0], [0], [1], [0, 0, 1, 1], [], []>} : vector<16x16xbf16>, vector<16x32xbf16>, vector<16x32xf32> -> vector<16x32xf32>
    %96 = arith.addf %95, %93 : vector<16x32xf32>
    %c2_63 = arith.constant 2 : index
    %c0_64 = arith.constant 0 : index
    %c0_65 = arith.constant 0 : index
    %97 = vector.load %arg9[%c2_63, %c0_64, %c0_65] : memref<3x1x32xf32, #tpu.memory_space<vmem>>, vector<1x1x32xf32>
    %98 = vector.shape_cast %97 : vector<1x1x32xf32> to vector<1x32xf32>
    %99 = vector.broadcast %98 : vector<1x32xf32> to vector<16x32xf32>
    %100 = arith.addf %96, %99 : vector<16x32xf32>
    %cst_66 = arith.constant 0.000000e+00 : f32
    %101 = vector.broadcast %cst_66 : f32 to vector<16x32xf32>
    %102 = arith.maximumf %100, %101 : vector<16x32xf32>
    %cst_67 = arith.constant dense<0.000000e+00> : vector<32xf32>
    %103 = vector.multi_reduction <add>, %102, %cst_67 [0] : vector<16x32xf32> to vector<32xf32>
    %104 = vector.shape_cast %103 : vector<32xf32> to vector<1x32xf32>
    %cst_68 = arith.constant 6.250000e-02 : f32
    %105 = vector.broadcast %cst_68 : f32 to vector<1x32xf32>
    %106 = arith.mulf %104, %105 : vector<1x32xf32>
    %107 = vector.broadcast %106 : vector<1x32xf32> to vector<16x32xf32>
    %108 = arith.subf %102, %107 : vector<16x32xf32>
    %109 = arith.mulf %108, %108 : vector<16x32xf32>
    %cst_69 = arith.constant dense<0.000000e+00> : vector<32xf32>
    %110 = vector.multi_reduction <add>, %109, %cst_69 [0] : vector<16x32xf32> to vector<32xf32>
    %111 = vector.shape_cast %110 : vector<32xf32> to vector<1x32xf32>
    %cst_70 = arith.constant 6.250000e-02 : f32
    %112 = vector.broadcast %cst_70 : f32 to vector<1x32xf32>
    %113 = arith.mulf %111, %112 : vector<1x32xf32>
    %c2_71 = arith.constant 2 : index
    %c0_72 = arith.constant 0 : index
    %c0_73 = arith.constant 0 : index
    %114 = vector.load %arg10[%c2_71, %c0_72, %c0_73] : memref<3x1x32xf32, #tpu.memory_space<vmem>>, vector<1x1x32xf32>
    %115 = vector.shape_cast %114 : vector<1x1x32xf32> to vector<1x32xf32>
    %cst_74 = arith.constant 9.99999974E-6 : f32
    %116 = vector.broadcast %cst_74 : f32 to vector<1x32xf32>
    %117 = arith.addf %113, %116 : vector<1x32xf32>
    %118 = math.rsqrt %117 : vector<1x32xf32>
    %119 = arith.mulf %115, %118 : vector<1x32xf32>
    %120 = vector.broadcast %119 : vector<1x32xf32> to vector<16x32xf32>
    %121 = arith.mulf %108, %120 : vector<16x32xf32>
    %c2_75 = arith.constant 2 : index
    %c0_76 = arith.constant 0 : index
    %c0_77 = arith.constant 0 : index
    %122 = vector.load %arg11[%c2_75, %c0_76, %c0_77] : memref<3x1x32xf32, #tpu.memory_space<vmem>>, vector<1x1x32xf32>
    %123 = vector.shape_cast %122 : vector<1x1x32xf32> to vector<1x32xf32>
    %124 = vector.broadcast %123 : vector<1x32xf32> to vector<16x32xf32>
    %125 = arith.addf %121, %124 : vector<16x32xf32>
    %126 = arith.truncf %125 : vector<16x32xf32> to vector<16x32xbf16>
    %c0_78 = arith.constant 0 : index
    %c0_79 = arith.constant 0 : index
    %127 = vector.load %arg12[%c0_78, %c0_79] : memref<32x32xbf16, #tpu.memory_space<vmem>>, vector<32x32xbf16>
    %cst_80 = arith.constant dense<0.000000e+00> : vector<16x32xf32>
    %128 = tpu.matmul %126, %127, %cst_80 {dimension_numbers = #tpu.dot_dimension_numbers<[1], [0], [0], [1], [0, 0, 1, 1], [], []>} : vector<16x32xbf16>, vector<32x32xbf16>, vector<16x32xf32> -> vector<16x32xf32>
    %c0_81 = arith.constant 0 : index
    %c0_82 = arith.constant 0 : index
    %129 = vector.load %arg19[%c0_81, %c0_82] : memref<16x32xf32, #tpu.memory_space<vmem>>, vector<16x32xf32>
    tpu.vector_store %arg19[%c0_81, %c0_82], %128 {strides = array<i32>} : memref<16x32xf32, #tpu.memory_space<vmem>>, vector<16x32xf32>,
    %c0_83 = arith.constant 0 : index
    %c0_84 = arith.constant 0 : index
    %130 = vector.load %arg13[%c0_83, %c0_84] : memref<32x32xbf16, #tpu.memory_space<vmem>>, vector<32x32xbf16>
    %cst_85 = arith.constant dense<0.000000e+00> : vector<16x32xf32>
    %131 = tpu.matmul %126, %130, %cst_85 {dimension_numbers = #tpu.dot_dimension_numbers<[1], [0], [0], [1], [0, 0, 1, 1], [], []>} : vector<16x32xbf16>, vector<32x32xbf16>, vector<16x32xf32> -> vector<16x32xf32>
    %c0_86 = arith.constant 0 : index
    %c0_87 = arith.constant 0 : index
    %132 = vector.load %arg20[%c0_86, %c0_87] : memref<16x32xf32, #tpu.memory_space<vmem>>, vector<16x32xf32>
    tpu.vector_store %arg20[%c0_86, %c0_87], %131 {strides = array<i32>} : memref<16x32xf32, #tpu.memory_space<vmem>>, vector<16x32xf32>,
    %c0_i32 = arith.constant 0 : i32
    %133 = arith.index_cast %c0_i32 : i32 to index
    %134 = memref.load %arg0[%133] : memref<32xi32, #tpu.memory_space<smem>>
    %135 = arith.index_cast %c0_i32 : i32 to index
    %136 = memref.load %arg1[%135] : memref<32xi32, #tpu.memory_space<smem>>
    %137 = arith.index_cast %134 : i32 to index
    %c0_88 = arith.constant 0 : index
    %138 = vector.load %arg19[%137, %c0_88] : memref<16x32xf32, #tpu.memory_space<vmem>>, vector<1x32xf32>
    %139 = arith.index_cast %136 : i32 to index
    %c0_89 = arith.constant 0 : index
    %140 = vector.load %arg20[%139, %c0_89] : memref<16x32xf32, #tpu.memory_space<vmem>>, vector<1x32xf32>
    %141 = arith.addf %138, %140 : vector<1x32xf32>
    %142 = arith.index_cast %c0_i32 : i32 to index
    %c0_90 = arith.constant 0 : index
    %143 = vector.load %arg21[%142, %c0_90] : memref<32x32xf32, #tpu.memory_space<vmem>>, vector<1x32xf32>
    tpu.vector_store %arg21[%142, %c0_90], %141 {strides = array<i32>} : memref<32x32xf32, #tpu.memory_space<vmem>>, vector<1x32xf32>,
    %c1_i32 = arith.constant 1 : i32
    %144 = arith.index_cast %c1_i32 : i32 to index
    %145 = memref.load %arg0[%144] : memref<32xi32, #tpu.memory_space<smem>>
    %146 = arith.index_cast %c1_i32 : i32 to index
    %147 = memref.load %arg1[%146] : memref<32xi32, #tpu.memory_space<smem>>
    %148 = arith.index_cast %145 : i32 to index
    %c0_91 = arith.constant 0 : index
    %149 = vector.load %arg19[%148, %c0_91] : memref<16x32xf32, #tpu.memory_space<vmem>>, vector<1x32xf32>
    %150 = arith.index_cast %147 : i32 to index
    %c0_92 = arith.constant 0 : index
    %151 = vector.load %arg20[%150, %c0_92] : memref<16x32xf32, #tpu.memory_space<vmem>>, vector<1x32xf32>
    %152 = arith.addf %149, %151 : vector<1x32xf32>
    %153 = arith.index_cast %c1_i32 : i32 to index
    %c0_93 = arith.constant 0 : index
    %154 = vector.load %arg21[%153, %c0_93] : memref<32x32xf32, #tpu.memory_space<vmem>>, vector<1x32xf32>
    tpu.vector_store %arg21[%153, %c0_93], %152 {strides = array<i32>} : memref<32x32xf32, #tpu.memory_space<vmem>>, vector<1x32xf32>,
    %c2_i32 = arith.constant 2 : i32
    %155 = arith.index_cast %c2_i32 : i32 to index
    %156 = memref.load %arg0[%155] : memref<32xi32, #tpu.memory_space<smem>>
    %157 = arith.index_cast %c2_i32 : i32 to index
    %158 = memref.load %arg1[%157] : memref<32xi32, #tpu.memory_space<smem>>
    %159 = arith.index_cast %156 : i32 to index
    %c0_94 = arith.constant 0 : index
    %160 = vector.load %arg19[%159, %c0_94] : memref<16x32xf32, #tpu.memory_space<vmem>>, vector<1x32xf32>
    %161 = arith.index_cast %158 : i32 to index
    %c0_95 = arith.constant 0 : index
    %162 = vector.load %arg20[%161, %c0_95] : memref<16x32xf32, #tpu.memory_space<vmem>>, vector<1x32xf32>
    %163 = arith.addf %160, %162 : vector<1x32xf32>
    %164 = arith.index_cast %c2_i32 : i32 to index
    %c0_96 = arith.constant 0 : index
    %165 = vector.load %arg21[%164, %c0_96] : memref<32x32xf32, #tpu.memory_space<vmem>>, vector<1x32xf32>
    tpu.vector_store %arg21[%164, %c0_96], %163 {strides = array<i32>} : memref<32x32xf32, #tpu.memory_space<vmem>>, vector<1x32xf32>,
    %c3_i32 = arith.constant 3 : i32
    %166 = arith.index_cast %c3_i32 : i32 to index
    %167 = memref.load %arg0[%166] : memref<32xi32, #tpu.memory_space<smem>>
    %168 = arith.index_cast %c3_i32 : i32 to index
    %169 = memref.load %arg1[%168] : memref<32xi32, #tpu.memory_space<smem>>
    %170 = arith.index_cast %167 : i32 to index
    %c0_97 = arith.constant 0 : index
    %171 = vector.load %arg19[%170, %c0_97] : memref<16x32xf32, #tpu.memory_space<vmem>>, vector<1x32xf32>
    %172 = arith.index_cast %169 : i32 to index
    %c0_98 = arith.constant 0 : index
    %173 = vector.load %arg20[%172, %c0_98] : memref<16x32xf32, #tpu.memory_space<vmem>>, vector<1x32xf32>
    %174 = arith.addf %171, %173 : vector<1x32xf32>
    %175 = arith.index_cast %c3_i32 : i32 to index
    %c0_99 = arith.constant 0 : index
    %176 = vector.load %arg21[%175, %c0_99] : memref<32x32xf32, #tpu.memory_space<vmem>>, vector<1x32xf32>
    tpu.vector_store %arg21[%175, %c0_99], %174 {strides = array<i32>} : memref<32x32xf32, #tpu.memory_space<vmem>>, vector<1x32xf32>,
    %c4_i32 = arith.constant 4 : i32
    %177 = arith.index_cast %c4_i32 : i32 to index
    %178 = memref.load %arg0[%177] : memref<32xi32, #tpu.memory_space<smem>>
    %179 = arith.index_cast %c4_i32 : i32 to index
    %180 = memref.load %arg1[%179] : memref<32xi32, #tpu.memory_space<smem>>
    %181 = arith.index_cast %178 : i32 to index
    %c0_100 = arith.constant 0 : index
    %182 = vector.load %arg19[%181, %c0_100] : memref<16x32xf32, #tpu.memory_space<vmem>>, vector<1x32xf32>
    %183 = arith.index_cast %180 : i32 to index
    %c0_101 = arith.constant 0 : index
    %184 = vector.load %arg20[%183, %c0_101] : memref<16x32xf32, #tpu.memory_space<vmem>>, vector<1x32xf32>
    %185 = arith.addf %182, %184 : vector<1x32xf32>
    %186 = arith.index_cast %c4_i32 : i32 to index
    %c0_102 = arith.constant 0 : index
    %187 = vector.load %arg21[%186, %c0_102] : memref<32x32xf32, #tpu.memory_space<vmem>>, vector<1x32xf32>
    tpu.vector_store %arg21[%186, %c0_102], %185 {strides = array<i32>} : memref<32x32xf32, #tpu.memory_space<vmem>>, vector<1x32xf32>,
    %c5_i32 = arith.constant 5 : i32
    %188 = arith.index_cast %c5_i32 : i32 to index
    %189 = memref.load %arg0[%188] : memref<32xi32, #tpu.memory_space<smem>>
    %190 = arith.index_cast %c5_i32 : i32 to index
    %191 = memref.load %arg1[%190] : memref<32xi32, #tpu.memory_space<smem>>
    %192 = arith.index_cast %189 : i32 to index
    %c0_103 = arith.constant 0 : index
    %193 = vector.load %arg19[%192, %c0_103] : memref<16x32xf32, #tpu.memory_space<vmem>>, vector<1x32xf32>
    %194 = arith.index_cast %191 : i32 to index
    %c0_104 = arith.constant 0 : index
    %195 = vector.load %arg20[%194, %c0_104] : memref<16x32xf32, #tpu.memory_space<vmem>>, vector<1x32xf32>
    %196 = arith.addf %193, %195 : vector<1x32xf32>
    %197 = arith.index_cast %c5_i32 : i32 to index
    %c0_105 = arith.constant 0 : index
    %198 = vector.load %arg21[%197, %c0_105] : memref<32x32xf32, #tpu.memory_space<vmem>>, vector<1x32xf32>
    tpu.vector_store %arg21[%197, %c0_105], %196 {strides = array<i32>} : memref<32x32xf32, #tpu.memory_space<vmem>>, vector<1x32xf32>,
    %c6_i32 = arith.constant 6 : i32
    %199 = arith.index_cast %c6_i32 : i32 to index
    %200 = memref.load %arg0[%199] : memref<32xi32, #tpu.memory_space<smem>>
    %201 = arith.index_cast %c6_i32 : i32 to index
    %202 = memref.load %arg1[%201] : memref<32xi32, #tpu.memory_space<smem>>
    %203 = arith.index_cast %200 : i32 to index
    %c0_106 = arith.constant 0 : index
    %204 = vector.load %arg19[%203, %c0_106] : memref<16x32xf32, #tpu.memory_space<vmem>>, vector<1x32xf32>
    %205 = arith.index_cast %202 : i32 to index
    %c0_107 = arith.constant 0 : index
    %206 = vector.load %arg20[%205, %c0_107] : memref<16x32xf32, #tpu.memory_space<vmem>>, vector<1x32xf32>
    %207 = arith.addf %204, %206 : vector<1x32xf32>
    %208 = arith.index_cast %c6_i32 : i32 to index
    %c0_108 = arith.constant 0 : index
    %209 = vector.load %arg21[%208, %c0_108] : memref<32x32xf32, #tpu.memory_space<vmem>>, vector<1x32xf32>
    tpu.vector_store %arg21[%208, %c0_108], %207 {strides = array<i32>} : memref<32x32xf32, #tpu.memory_space<vmem>>, vector<1x32xf32>,
    %c7_i32 = arith.constant 7 : i32
    %210 = arith.index_cast %c7_i32 : i32 to index
    %211 = memref.load %arg0[%210] : memref<32xi32, #tpu.memory_space<smem>>
    %212 = arith.index_cast %c7_i32 : i32 to index
    %213 = memref.load %arg1[%212] : memref<32xi32, #tpu.memory_space<smem>>
    %214 = arith.index_cast %211 : i32 to index
    %c0_109 = arith.constant 0 : index
    %215 = vector.load %arg19[%214, %c0_109] : memref<16x32xf32, #tpu.memory_space<vmem>>, vector<1x32xf32>
    %216 = arith.index_cast %213 : i32 to index
    %c0_110 = arith.constant 0 : index
    %217 = vector.load %arg20[%216, %c0_110] : memref<16x32xf32, #tpu.memory_space<vmem>>, vector<1x32xf32>
    %218 = arith.addf %215, %217 : vector<1x32xf32>
    %219 = arith.index_cast %c7_i32 : i32 to index
    %c0_111 = arith.constant 0 : index
    %220 = vector.load %arg21[%219, %c0_111] : memref<32x32xf32, #tpu.memory_space<vmem>>, vector<1x32xf32>
    tpu.vector_store %arg21[%219, %c0_111], %218 {strides = array<i32>} : memref<32x32xf32, #tpu.memory_space<vmem>>, vector<1x32xf32>,
    %c8_i32 = arith.constant 8 : i32
    %221 = arith.index_cast %c8_i32 : i32 to index
    %222 = memref.load %arg0[%221] : memref<32xi32, #tpu.memory_space<smem>>
    %223 = arith.index_cast %c8_i32 : i32 to index
    %224 = memref.load %arg1[%223] : memref<32xi32, #tpu.memory_space<smem>>
    %225 = arith.index_cast %222 : i32 to index
    %c0_112 = arith.constant 0 : index
    %226 = vector.load %arg19[%225, %c0_112] : memref<16x32xf32, #tpu.memory_space<vmem>>, vector<1x32xf32>
    %227 = arith.index_cast %224 : i32 to index
    %c0_113 = arith.constant 0 : index
    %228 = vector.load %arg20[%227, %c0_113] : memref<16x32xf32, #tpu.memory_space<vmem>>, vector<1x32xf32>
    %229 = arith.addf %226, %228 : vector<1x32xf32>
    %230 = arith.index_cast %c8_i32 : i32 to index
    %c0_114 = arith.constant 0 : index
    %231 = vector.load %arg21[%230, %c0_114] : memref<32x32xf32, #tpu.memory_space<vmem>>, vector<1x32xf32>
    tpu.vector_store %arg21[%230, %c0_114], %229 {strides = array<i32>} : memref<32x32xf32, #tpu.memory_space<vmem>>, vector<1x32xf32>,
    %c9_i32 = arith.constant 9 : i32
    %232 = arith.index_cast %c9_i32 : i32 to index
    %233 = memref.load %arg0[%232] : memref<32xi32, #tpu.memory_space<smem>>
    %234 = arith.index_cast %c9_i32 : i32 to index
    %235 = memref.load %arg1[%234] : memref<32xi32, #tpu.memory_space<smem>>
    %236 = arith.index_cast %233 : i32 to index
    %c0_115 = arith.constant 0 : index
    %237 = vector.load %arg19[%236, %c0_115] : memref<16x32xf32, #tpu.memory_space<vmem>>, vector<1x32xf32>
    %238 = arith.index_cast %235 : i32 to index
    %c0_116 = arith.constant 0 : index
    %239 = vector.load %arg20[%238, %c0_116] : memref<16x32xf32, #tpu.memory_space<vmem>>, vector<1x32xf32>
    %240 = arith.addf %237, %239 : vector<1x32xf32>
    %241 = arith.index_cast %c9_i32 : i32 to index
    %c0_117 = arith.constant 0 : index
    %242 = vector.load %arg21[%241, %c0_117] : memref<32x32xf32, #tpu.memory_space<vmem>>, vector<1x32xf32>
    tpu.vector_store %arg21[%241, %c0_117], %240 {strides = array<i32>} : memref<32x32xf32, #tpu.memory_space<vmem>>, vector<1x32xf32>,
    %c10_i32 = arith.constant 10 : i32
    %243 = arith.index_cast %c10_i32 : i32 to index
    %244 = memref.load %arg0[%243] : memref<32xi32, #tpu.memory_space<smem>>
    %245 = arith.index_cast %c10_i32 : i32 to index
    %246 = memref.load %arg1[%245] : memref<32xi32, #tpu.memory_space<smem>>
    %247 = arith.index_cast %244 : i32 to index
    %c0_118 = arith.constant 0 : index
    %248 = vector.load %arg19[%247, %c0_118] : memref<16x32xf32, #tpu.memory_space<vmem>>, vector<1x32xf32>
    %249 = arith.index_cast %246 : i32 to index
    %c0_119 = arith.constant 0 : index
    %250 = vector.load %arg20[%249, %c0_119] : memref<16x32xf32, #tpu.memory_space<vmem>>, vector<1x32xf32>
    %251 = arith.addf %248, %250 : vector<1x32xf32>
    %252 = arith.index_cast %c10_i32 : i32 to index
    %c0_120 = arith.constant 0 : index
    %253 = vector.load %arg21[%252, %c0_120] : memref<32x32xf32, #tpu.memory_space<vmem>>, vector<1x32xf32>
    tpu.vector_store %arg21[%252, %c0_120], %251 {strides = array<i32>} : memref<32x32xf32, #tpu.memory_space<vmem>>, vector<1x32xf32>,
    %c11_i32 = arith.constant 11 : i32
    %254 = arith.index_cast %c11_i32 : i32 to index
    %255 = memref.load %arg0[%254] : memref<32xi32, #tpu.memory_space<smem>>
    %256 = arith.index_cast %c11_i32 : i32 to index
    %257 = memref.load %arg1[%256] : memref<32xi32, #tpu.memory_space<smem>>
    %258 = arith.index_cast %255 : i32 to index
    %c0_121 = arith.constant 0 : index
    %259 = vector.load %arg19[%258, %c0_121] : memref<16x32xf32, #tpu.memory_space<vmem>>, vector<1x32xf32>
    %260 = arith.index_cast %257 : i32 to index
    %c0_122 = arith.constant 0 : index
    %261 = vector.load %arg20[%260, %c0_122] : memref<16x32xf32, #tpu.memory_space<vmem>>, vector<1x32xf32>
    %262 = arith.addf %259, %261 : vector<1x32xf32>
    %263 = arith.index_cast %c11_i32 : i32 to index
    %c0_123 = arith.constant 0 : index
    %264 = vector.load %arg21[%263, %c0_123] : memref<32x32xf32, #tpu.memory_space<vmem>>, vector<1x32xf32>
    tpu.vector_store %arg21[%263, %c0_123], %262 {strides = array<i32>} : memref<32x32xf32, #tpu.memory_space<vmem>>, vector<1x32xf32>,
    %c12_i32 = arith.constant 12 : i32
    %265 = arith.index_cast %c12_i32 : i32 to index
    %266 = memref.load %arg0[%265] : memref<32xi32, #tpu.memory_space<smem>>
    %267 = arith.index_cast %c12_i32 : i32 to index
    %268 = memref.load %arg1[%267] : memref<32xi32, #tpu.memory_space<smem>>
    %269 = arith.index_cast %266 : i32 to index
    %c0_124 = arith.constant 0 : index
    %270 = vector.load %arg19[%269, %c0_124] : memref<16x32xf32, #tpu.memory_space<vmem>>, vector<1x32xf32>
    %271 = arith.index_cast %268 : i32 to index
    %c0_125 = arith.constant 0 : index
    %272 = vector.load %arg20[%271, %c0_125] : memref<16x32xf32, #tpu.memory_space<vmem>>, vector<1x32xf32>
    %273 = arith.addf %270, %272 : vector<1x32xf32>
    %274 = arith.index_cast %c12_i32 : i32 to index
    %c0_126 = arith.constant 0 : index
    %275 = vector.load %arg21[%274, %c0_126] : memref<32x32xf32, #tpu.memory_space<vmem>>, vector<1x32xf32>
    tpu.vector_store %arg21[%274, %c0_126], %273 {strides = array<i32>} : memref<32x32xf32, #tpu.memory_space<vmem>>, vector<1x32xf32>,
    %c13_i32 = arith.constant 13 : i32
    %276 = arith.index_cast %c13_i32 : i32 to index
    %277 = memref.load %arg0[%276] : memref<32xi32, #tpu.memory_space<smem>>
    %278 = arith.index_cast %c13_i32 : i32 to index
    %279 = memref.load %arg1[%278] : memref<32xi32, #tpu.memory_space<smem>>
    %280 = arith.index_cast %277 : i32 to index
    %c0_127 = arith.constant 0 : index
    %281 = vector.load %arg19[%280, %c0_127] : memref<16x32xf32, #tpu.memory_space<vmem>>, vector<1x32xf32>
    %282 = arith.index_cast %279 : i32 to index
    %c0_128 = arith.constant 0 : index
    %283 = vector.load %arg20[%282, %c0_128] : memref<16x32xf32, #tpu.memory_space<vmem>>, vector<1x32xf32>
    %284 = arith.addf %281, %283 : vector<1x32xf32>
    %285 = arith.index_cast %c13_i32 : i32 to index
    %c0_129 = arith.constant 0 : index
    %286 = vector.load %arg21[%285, %c0_129] : memref<32x32xf32, #tpu.memory_space<vmem>>, vector<1x32xf32>
    tpu.vector_store %arg21[%285, %c0_129], %284 {strides = array<i32>} : memref<32x32xf32, #tpu.memory_space<vmem>>, vector<1x32xf32>,
    %c14_i32 = arith.constant 14 : i32
    %287 = arith.index_cast %c14_i32 : i32 to index
    %288 = memref.load %arg0[%287] : memref<32xi32, #tpu.memory_space<smem>>
    %289 = arith.index_cast %c14_i32 : i32 to index
    %290 = memref.load %arg1[%289] : memref<32xi32, #tpu.memory_space<smem>>
    %291 = arith.index_cast %288 : i32 to index
    %c0_130 = arith.constant 0 : index
    %292 = vector.load %arg19[%291, %c0_130] : memref<16x32xf32, #tpu.memory_space<vmem>>, vector<1x32xf32>
    %293 = arith.index_cast %290 : i32 to index
    %c0_131 = arith.constant 0 : index
    %294 = vector.load %arg20[%293, %c0_131] : memref<16x32xf32, #tpu.memory_space<vmem>>, vector<1x32xf32>
    %295 = arith.addf %292, %294 : vector<1x32xf32>
    %296 = arith.index_cast %c14_i32 : i32 to index
    %c0_132 = arith.constant 0 : index
    %297 = vector.load %arg21[%296, %c0_132] : memref<32x32xf32, #tpu.memory_space<vmem>>, vector<1x32xf32>
    tpu.vector_store %arg21[%296, %c0_132], %295 {strides = array<i32>} : memref<32x32xf32, #tpu.memory_space<vmem>>, vector<1x32xf32>,
    %c15_i32 = arith.constant 15 : i32
    %298 = arith.index_cast %c15_i32 : i32 to index
    %299 = memref.load %arg0[%298] : memref<32xi32, #tpu.memory_space<smem>>
    %300 = arith.index_cast %c15_i32 : i32 to index
    %301 = memref.load %arg1[%300] : memref<32xi32, #tpu.memory_space<smem>>
    %302 = arith.index_cast %299 : i32 to index
    %c0_133 = arith.constant 0 : index
    %303 = vector.load %arg19[%302, %c0_133] : memref<16x32xf32, #tpu.memory_space<vmem>>, vector<1x32xf32>
    %304 = arith.index_cast %301 : i32 to index
    %c0_134 = arith.constant 0 : index
    %305 = vector.load %arg20[%304, %c0_134] : memref<16x32xf32, #tpu.memory_space<vmem>>, vector<1x32xf32>
    %306 = arith.addf %303, %305 : vector<1x32xf32>
    %307 = arith.index_cast %c15_i32 : i32 to index
    %c0_135 = arith.constant 0 : index
    %308 = vector.load %arg21[%307, %c0_135] : memref<32x32xf32, #tpu.memory_space<vmem>>, vector<1x32xf32>
    tpu.vector_store %arg21[%307, %c0_135], %306 {strides = array<i32>} : memref<32x32xf32, #tpu.memory_space<vmem>>, vector<1x32xf32>,
    %c16_i32 = arith.constant 16 : i32
    %309 = arith.index_cast %c16_i32 : i32 to index
    %310 = memref.load %arg0[%309] : memref<32xi32, #tpu.memory_space<smem>>
    %311 = arith.index_cast %c16_i32 : i32 to index
    %312 = memref.load %arg1[%311] : memref<32xi32, #tpu.memory_space<smem>>
    %313 = arith.index_cast %310 : i32 to index
    %c0_136 = arith.constant 0 : index
    %314 = vector.load %arg19[%313, %c0_136] : memref<16x32xf32, #tpu.memory_space<vmem>>, vector<1x32xf32>
    %315 = arith.index_cast %312 : i32 to index
    %c0_137 = arith.constant 0 : index
    %316 = vector.load %arg20[%315, %c0_137] : memref<16x32xf32, #tpu.memory_space<vmem>>, vector<1x32xf32>
    %317 = arith.addf %314, %316 : vector<1x32xf32>
    %318 = arith.index_cast %c16_i32 : i32 to index
    %c0_138 = arith.constant 0 : index
    %319 = vector.load %arg21[%318, %c0_138] : memref<32x32xf32, #tpu.memory_space<vmem>>, vector<1x32xf32>
    tpu.vector_store %arg21[%318, %c0_138], %317 {strides = array<i32>} : memref<32x32xf32, #tpu.memory_space<vmem>>, vector<1x32xf32>,
    %c17_i32 = arith.constant 17 : i32
    %320 = arith.index_cast %c17_i32 : i32 to index
    %321 = memref.load %arg0[%320] : memref<32xi32, #tpu.memory_space<smem>>
    %322 = arith.index_cast %c17_i32 : i32 to index
    %323 = memref.load %arg1[%322] : memref<32xi32, #tpu.memory_space<smem>>
    %324 = arith.index_cast %321 : i32 to index
    %c0_139 = arith.constant 0 : index
    %325 = vector.load %arg19[%324, %c0_139] : memref<16x32xf32, #tpu.memory_space<vmem>>, vector<1x32xf32>
    %326 = arith.index_cast %323 : i32 to index
    %c0_140 = arith.constant 0 : index
    %327 = vector.load %arg20[%326, %c0_140] : memref<16x32xf32, #tpu.memory_space<vmem>>, vector<1x32xf32>
    %328 = arith.addf %325, %327 : vector<1x32xf32>
    %329 = arith.index_cast %c17_i32 : i32 to index
    %c0_141 = arith.constant 0 : index
    %330 = vector.load %arg21[%329, %c0_141] : memref<32x32xf32, #tpu.memory_space<vmem>>, vector<1x32xf32>
    tpu.vector_store %arg21[%329, %c0_141], %328 {strides = array<i32>} : memref<32x32xf32, #tpu.memory_space<vmem>>, vector<1x32xf32>,
    %c18_i32 = arith.constant 18 : i32
    %331 = arith.index_cast %c18_i32 : i32 to index
    %332 = memref.load %arg0[%331] : memref<32xi32, #tpu.memory_space<smem>>
    %333 = arith.index_cast %c18_i32 : i32 to index
    %334 = memref.load %arg1[%333] : memref<32xi32, #tpu.memory_space<smem>>
    %335 = arith.index_cast %332 : i32 to index
    %c0_142 = arith.constant 0 : index
    %336 = vector.load %arg19[%335, %c0_142] : memref<16x32xf32, #tpu.memory_space<vmem>>, vector<1x32xf32>
    %337 = arith.index_cast %334 : i32 to index
    %c0_143 = arith.constant 0 : index
    %338 = vector.load %arg20[%337, %c0_143] : memref<16x32xf32, #tpu.memory_space<vmem>>, vector<1x32xf32>
    %339 = arith.addf %336, %338 : vector<1x32xf32>
    %340 = arith.index_cast %c18_i32 : i32 to index
    %c0_144 = arith.constant 0 : index
    %341 = vector.load %arg21[%340, %c0_144] : memref<32x32xf32, #tpu.memory_space<vmem>>, vector<1x32xf32>
    tpu.vector_store %arg21[%340, %c0_144], %339 {strides = array<i32>} : memref<32x32xf32, #tpu.memory_space<vmem>>, vector<1x32xf32>,
    %c19_i32 = arith.constant 19 : i32
    %342 = arith.index_cast %c19_i32 : i32 to index
    %343 = memref.load %arg0[%342] : memref<32xi32, #tpu.memory_space<smem>>
    %344 = arith.index_cast %c19_i32 : i32 to index
    %345 = memref.load %arg1[%344] : memref<32xi32, #tpu.memory_space<smem>>
    %346 = arith.index_cast %343 : i32 to index
    %c0_145 = arith.constant 0 : index
    %347 = vector.load %arg19[%346, %c0_145] : memref<16x32xf32, #tpu.memory_space<vmem>>, vector<1x32xf32>
    %348 = arith.index_cast %345 : i32 to index
    %c0_146 = arith.constant 0 : index
    %349 = vector.load %arg20[%348, %c0_146] : memref<16x32xf32, #tpu.memory_space<vmem>>, vector<1x32xf32>
    %350 = arith.addf %347, %349 : vector<1x32xf32>
    %351 = arith.index_cast %c19_i32 : i32 to index
    %c0_147 = arith.constant 0 : index
    %352 = vector.load %arg21[%351, %c0_147] : memref<32x32xf32, #tpu.memory_space<vmem>>, vector<1x32xf32>
    tpu.vector_store %arg21[%351, %c0_147], %350 {strides = array<i32>} : memref<32x32xf32, #tpu.memory_space<vmem>>, vector<1x32xf32>,
    %c20_i32 = arith.constant 20 : i32
    %353 = arith.index_cast %c20_i32 : i32 to index
    %354 = memref.load %arg0[%353] : memref<32xi32, #tpu.memory_space<smem>>
    %355 = arith.index_cast %c20_i32 : i32 to index
    %356 = memref.load %arg1[%355] : memref<32xi32, #tpu.memory_space<smem>>
    %357 = arith.index_cast %354 : i32 to index
    %c0_148 = arith.constant 0 : index
    %358 = vector.load %arg19[%357, %c0_148] : memref<16x32xf32, #tpu.memory_space<vmem>>, vector<1x32xf32>
    %359 = arith.index_cast %356 : i32 to index
    %c0_149 = arith.constant 0 : index
    %360 = vector.load %arg20[%359, %c0_149] : memref<16x32xf32, #tpu.memory_space<vmem>>, vector<1x32xf32>
    %361 = arith.addf %358, %360 : vector<1x32xf32>
    %362 = arith.index_cast %c20_i32 : i32 to index
    %c0_150 = arith.constant 0 : index
    %363 = vector.load %arg21[%362, %c0_150] : memref<32x32xf32, #tpu.memory_space<vmem>>, vector<1x32xf32>
    tpu.vector_store %arg21[%362, %c0_150], %361 {strides = array<i32>} : memref<32x32xf32, #tpu.memory_space<vmem>>, vector<1x32xf32>,
    %c21_i32 = arith.constant 21 : i32
    %364 = arith.index_cast %c21_i32 : i32 to index
    %365 = memref.load %arg0[%364] : memref<32xi32, #tpu.memory_space<smem>>
    %366 = arith.index_cast %c21_i32 : i32 to index
    %367 = memref.load %arg1[%366] : memref<32xi32, #tpu.memory_space<smem>>
    %368 = arith.index_cast %365 : i32 to index
    %c0_151 = arith.constant 0 : index
    %369 = vector.load %arg19[%368, %c0_151] : memref<16x32xf32, #tpu.memory_space<vmem>>, vector<1x32xf32>
    %370 = arith.index_cast %367 : i32 to index
    %c0_152 = arith.constant 0 : index
    %371 = vector.load %arg20[%370, %c0_152] : memref<16x32xf32, #tpu.memory_space<vmem>>, vector<1x32xf32>
    %372 = arith.addf %369, %371 : vector<1x32xf32>
    %373 = arith.index_cast %c21_i32 : i32 to index
    %c0_153 = arith.constant 0 : index
    %374 = vector.load %arg21[%373, %c0_153] : memref<32x32xf32, #tpu.memory_space<vmem>>, vector<1x32xf32>
    tpu.vector_store %arg21[%373, %c0_153], %372 {strides = array<i32>} : memref<32x32xf32, #tpu.memory_space<vmem>>, vector<1x32xf32>,
    %c22_i32 = arith.constant 22 : i32
    %375 = arith.index_cast %c22_i32 : i32 to index
    %376 = memref.load %arg0[%375] : memref<32xi32, #tpu.memory_space<smem>>
    %377 = arith.index_cast %c22_i32 : i32 to index
    %378 = memref.load %arg1[%377] : memref<32xi32, #tpu.memory_space<smem>>
    %379 = arith.index_cast %376 : i32 to index
    %c0_154 = arith.constant 0 : index
    %380 = vector.load %arg19[%379, %c0_154] : memref<16x32xf32, #tpu.memory_space<vmem>>, vector<1x32xf32>
    %381 = arith.index_cast %378 : i32 to index
    %c0_155 = arith.constant 0 : index
    %382 = vector.load %arg20[%381, %c0_155] : memref<16x32xf32, #tpu.memory_space<vmem>>, vector<1x32xf32>
    %383 = arith.addf %380, %382 : vector<1x32xf32>
    %384 = arith.index_cast %c22_i32 : i32 to index
    %c0_156 = arith.constant 0 : index
    %385 = vector.load %arg21[%384, %c0_156] : memref<32x32xf32, #tpu.memory_space<vmem>>, vector<1x32xf32>
    tpu.vector_store %arg21[%384, %c0_156], %383 {strides = array<i32>} : memref<32x32xf32, #tpu.memory_space<vmem>>, vector<1x32xf32>,
    %c23_i32 = arith.constant 23 : i32
    %386 = arith.index_cast %c23_i32 : i32 to index
    %387 = memref.load %arg0[%386] : memref<32xi32, #tpu.memory_space<smem>>
    %388 = arith.index_cast %c23_i32 : i32 to index
    %389 = memref.load %arg1[%388] : memref<32xi32, #tpu.memory_space<smem>>
    %390 = arith.index_cast %387 : i32 to index
    %c0_157 = arith.constant 0 : index
    %391 = vector.load %arg19[%390, %c0_157] : memref<16x32xf32, #tpu.memory_space<vmem>>, vector<1x32xf32>
    %392 = arith.index_cast %389 : i32 to index
    %c0_158 = arith.constant 0 : index
    %393 = vector.load %arg20[%392, %c0_158] : memref<16x32xf32, #tpu.memory_space<vmem>>, vector<1x32xf32>
    %394 = arith.addf %391, %393 : vector<1x32xf32>
    %395 = arith.index_cast %c23_i32 : i32 to index
    %c0_159 = arith.constant 0 : index
    %396 = vector.load %arg21[%395, %c0_159] : memref<32x32xf32, #tpu.memory_space<vmem>>, vector<1x32xf32>
    tpu.vector_store %arg21[%395, %c0_159], %394 {strides = array<i32>} : memref<32x32xf32, #tpu.memory_space<vmem>>, vector<1x32xf32>,
    %c24_i32 = arith.constant 24 : i32
    %397 = arith.index_cast %c24_i32 : i32 to index
    %398 = memref.load %arg0[%397] : memref<32xi32, #tpu.memory_space<smem>>
    %399 = arith.index_cast %c24_i32 : i32 to index
    %400 = memref.load %arg1[%399] : memref<32xi32, #tpu.memory_space<smem>>
    %401 = arith.index_cast %398 : i32 to index
    %c0_160 = arith.constant 0 : index
    %402 = vector.load %arg19[%401, %c0_160] : memref<16x32xf32, #tpu.memory_space<vmem>>, vector<1x32xf32>
    %403 = arith.index_cast %400 : i32 to index
    %c0_161 = arith.constant 0 : index
    %404 = vector.load %arg20[%403, %c0_161] : memref<16x32xf32, #tpu.memory_space<vmem>>, vector<1x32xf32>
    %405 = arith.addf %402, %404 : vector<1x32xf32>
    %406 = arith.index_cast %c24_i32 : i32 to index
    %c0_162 = arith.constant 0 : index
    %407 = vector.load %arg21[%406, %c0_162] : memref<32x32xf32, #tpu.memory_space<vmem>>, vector<1x32xf32>
    tpu.vector_store %arg21[%406, %c0_162], %405 {strides = array<i32>} : memref<32x32xf32, #tpu.memory_space<vmem>>, vector<1x32xf32>,
    %c25_i32 = arith.constant 25 : i32
    %408 = arith.index_cast %c25_i32 : i32 to index
    %409 = memref.load %arg0[%408] : memref<32xi32, #tpu.memory_space<smem>>
    %410 = arith.index_cast %c25_i32 : i32 to index
    %411 = memref.load %arg1[%410] : memref<32xi32, #tpu.memory_space<smem>>
    %412 = arith.index_cast %409 : i32 to index
    %c0_163 = arith.constant 0 : index
    %413 = vector.load %arg19[%412, %c0_163] : memref<16x32xf32, #tpu.memory_space<vmem>>, vector<1x32xf32>
    %414 = arith.index_cast %411 : i32 to index
    %c0_164 = arith.constant 0 : index
    %415 = vector.load %arg20[%414, %c0_164] : memref<16x32xf32, #tpu.memory_space<vmem>>, vector<1x32xf32>
    %416 = arith.addf %413, %415 : vector<1x32xf32>
    %417 = arith.index_cast %c25_i32 : i32 to index
    %c0_165 = arith.constant 0 : index
    %418 = vector.load %arg21[%417, %c0_165] : memref<32x32xf32, #tpu.memory_space<vmem>>, vector<1x32xf32>
    tpu.vector_store %arg21[%417, %c0_165], %416 {strides = array<i32>} : memref<32x32xf32, #tpu.memory_space<vmem>>, vector<1x32xf32>,
    %c26_i32 = arith.constant 26 : i32
    %419 = arith.index_cast %c26_i32 : i32 to index
    %420 = memref.load %arg0[%419] : memref<32xi32, #tpu.memory_space<smem>>
    %421 = arith.index_cast %c26_i32 : i32 to index
    %422 = memref.load %arg1[%421] : memref<32xi32, #tpu.memory_space<smem>>
    %423 = arith.index_cast %420 : i32 to index
    %c0_166 = arith.constant 0 : index
    %424 = vector.load %arg19[%423, %c0_166] : memref<16x32xf32, #tpu.memory_space<vmem>>, vector<1x32xf32>
    %425 = arith.index_cast %422 : i32 to index
    %c0_167 = arith.constant 0 : index
    %426 = vector.load %arg20[%425, %c0_167] : memref<16x32xf32, #tpu.memory_space<vmem>>, vector<1x32xf32>
    %427 = arith.addf %424, %426 : vector<1x32xf32>
    %428 = arith.index_cast %c26_i32 : i32 to index
    %c0_168 = arith.constant 0 : index
    %429 = vector.load %arg21[%428, %c0_168] : memref<32x32xf32, #tpu.memory_space<vmem>>, vector<1x32xf32>
    tpu.vector_store %arg21[%428, %c0_168], %427 {strides = array<i32>} : memref<32x32xf32, #tpu.memory_space<vmem>>, vector<1x32xf32>,
    %c27_i32 = arith.constant 27 : i32
    %430 = arith.index_cast %c27_i32 : i32 to index
    %431 = memref.load %arg0[%430] : memref<32xi32, #tpu.memory_space<smem>>
    %432 = arith.index_cast %c27_i32 : i32 to index
    %433 = memref.load %arg1[%432] : memref<32xi32, #tpu.memory_space<smem>>
    %434 = arith.index_cast %431 : i32 to index
    %c0_169 = arith.constant 0 : index
    %435 = vector.load %arg19[%434, %c0_169] : memref<16x32xf32, #tpu.memory_space<vmem>>, vector<1x32xf32>
    %436 = arith.index_cast %433 : i32 to index
    %c0_170 = arith.constant 0 : index
    %437 = vector.load %arg20[%436, %c0_170] : memref<16x32xf32, #tpu.memory_space<vmem>>, vector<1x32xf32>
    %438 = arith.addf %435, %437 : vector<1x32xf32>
    %439 = arith.index_cast %c27_i32 : i32 to index
    %c0_171 = arith.constant 0 : index
    %440 = vector.load %arg21[%439, %c0_171] : memref<32x32xf32, #tpu.memory_space<vmem>>, vector<1x32xf32>
    tpu.vector_store %arg21[%439, %c0_171], %438 {strides = array<i32>} : memref<32x32xf32, #tpu.memory_space<vmem>>, vector<1x32xf32>,
    %c28_i32 = arith.constant 28 : i32
    %441 = arith.index_cast %c28_i32 : i32 to index
    %442 = memref.load %arg0[%441] : memref<32xi32, #tpu.memory_space<smem>>
    %443 = arith.index_cast %c28_i32 : i32 to index
    %444 = memref.load %arg1[%443] : memref<32xi32, #tpu.memory_space<smem>>
    %445 = arith.index_cast %442 : i32 to index
    %c0_172 = arith.constant 0 : index
    %446 = vector.load %arg19[%445, %c0_172] : memref<16x32xf32, #tpu.memory_space<vmem>>, vector<1x32xf32>
    %447 = arith.index_cast %444 : i32 to index
    %c0_173 = arith.constant 0 : index
    %448 = vector.load %arg20[%447, %c0_173] : memref<16x32xf32, #tpu.memory_space<vmem>>, vector<1x32xf32>
    %449 = arith.addf %446, %448 : vector<1x32xf32>
    %450 = arith.index_cast %c28_i32 : i32 to index
    %c0_174 = arith.constant 0 : index
    %451 = vector.load %arg21[%450, %c0_174] : memref<32x32xf32, #tpu.memory_space<vmem>>, vector<1x32xf32>
    tpu.vector_store %arg21[%450, %c0_174], %449 {strides = array<i32>} : memref<32x32xf32, #tpu.memory_space<vmem>>, vector<1x32xf32>,
    %c29_i32 = arith.constant 29 : i32
    %452 = arith.index_cast %c29_i32 : i32 to index
    %453 = memref.load %arg0[%452] : memref<32xi32, #tpu.memory_space<smem>>
    %454 = arith.index_cast %c29_i32 : i32 to index
    %455 = memref.load %arg1[%454] : memref<32xi32, #tpu.memory_space<smem>>
    %456 = arith.index_cast %453 : i32 to index
    %c0_175 = arith.constant 0 : index
    %457 = vector.load %arg19[%456, %c0_175] : memref<16x32xf32, #tpu.memory_space<vmem>>, vector<1x32xf32>
    %458 = arith.index_cast %455 : i32 to index
    %c0_176 = arith.constant 0 : index
    %459 = vector.load %arg20[%458, %c0_176] : memref<16x32xf32, #tpu.memory_space<vmem>>, vector<1x32xf32>
    %460 = arith.addf %457, %459 : vector<1x32xf32>
    %461 = arith.index_cast %c29_i32 : i32 to index
    %c0_177 = arith.constant 0 : index
    %462 = vector.load %arg21[%461, %c0_177] : memref<32x32xf32, #tpu.memory_space<vmem>>, vector<1x32xf32>
    tpu.vector_store %arg21[%461, %c0_177], %460 {strides = array<i32>} : memref<32x32xf32, #tpu.memory_space<vmem>>, vector<1x32xf32>,
    %c30_i32 = arith.constant 30 : i32
    %463 = arith.index_cast %c30_i32 : i32 to index
    %464 = memref.load %arg0[%463] : memref<32xi32, #tpu.memory_space<smem>>
    %465 = arith.index_cast %c30_i32 : i32 to index
    %466 = memref.load %arg1[%465] : memref<32xi32, #tpu.memory_space<smem>>
    %467 = arith.index_cast %464 : i32 to index
    %c0_178 = arith.constant 0 : index
    %468 = vector.load %arg19[%467, %c0_178] : memref<16x32xf32, #tpu.memory_space<vmem>>, vector<1x32xf32>
    %469 = arith.index_cast %466 : i32 to index
    %c0_179 = arith.constant 0 : index
    %470 = vector.load %arg20[%469, %c0_179] : memref<16x32xf32, #tpu.memory_space<vmem>>, vector<1x32xf32>
    %471 = arith.addf %468, %470 : vector<1x32xf32>
    %472 = arith.index_cast %c30_i32 : i32 to index
    %c0_180 = arith.constant 0 : index
    %473 = vector.load %arg21[%472, %c0_180] : memref<32x32xf32, #tpu.memory_space<vmem>>, vector<1x32xf32>
    tpu.vector_store %arg21[%472, %c0_180], %471 {strides = array<i32>} : memref<32x32xf32, #tpu.memory_space<vmem>>, vector<1x32xf32>,
    %c31_i32 = arith.constant 31 : i32
    %474 = arith.index_cast %c31_i32 : i32 to index
    %475 = memref.load %arg0[%474] : memref<32xi32, #tpu.memory_space<smem>>
    %476 = arith.index_cast %c31_i32 : i32 to index
    %477 = memref.load %arg1[%476] : memref<32xi32, #tpu.memory_space<smem>>
    %478 = arith.index_cast %475 : i32 to index
    %c0_181 = arith.constant 0 : index
    %479 = vector.load %arg19[%478, %c0_181] : memref<16x32xf32, #tpu.memory_space<vmem>>, vector<1x32xf32>
    %480 = arith.index_cast %477 : i32 to index
    %c0_182 = arith.constant 0 : index
    %481 = vector.load %arg20[%480, %c0_182] : memref<16x32xf32, #tpu.memory_space<vmem>>, vector<1x32xf32>
    %482 = arith.addf %479, %481 : vector<1x32xf32>
    %483 = arith.index_cast %c31_i32 : i32 to index
    %c0_183 = arith.constant 0 : index
    %484 = vector.load %arg21[%483, %c0_183] : memref<32x32xf32, #tpu.memory_space<vmem>>, vector<1x32xf32>
    tpu.vector_store %arg21[%483, %c0_183], %482 {strides = array<i32>} : memref<32x32xf32, #tpu.memory_space<vmem>>, vector<1x32xf32>,
    %c32_i32 = arith.constant 32 : i32
    %c0_184 = arith.constant 0 : index
    %c0_185 = arith.constant 0 : index
    %485 = vector.load %arg21[%c0_184, %c0_185] : memref<32x32xf32, #tpu.memory_space<vmem>>, vector<32x32xf32>
    %c0_186 = arith.constant 0 : index
    %c0_187 = arith.constant 0 : index
    %486 = vector.load %arg4[%c0_186, %c0_187] : memref<32x4xbf16, #tpu.memory_space<vmem>>, vector<32x4xbf16>
    %c0_188 = arith.constant 0 : index
    %c0_189 = arith.constant 0 : index
    %487 = vector.load %arg14[%c0_188, %c0_189] : memref<4x32xbf16, #tpu.memory_space<vmem>>, vector<4x32xbf16>
    %cst_190 = arith.constant dense<0.000000e+00> : vector<32x32xf32>
    %488 = tpu.matmul %486, %487, %cst_190 {dimension_numbers = #tpu.dot_dimension_numbers<[1], [0], [0], [1], [0, 0, 1, 1], [], []>} : vector<32x4xbf16>, vector<4x32xbf16>, vector<32x32xf32> -> vector<32x32xf32>
    %489 = arith.addf %485, %488 : vector<32x32xf32>
    %c0_191 = arith.constant 0 : index
    %c0_192 = arith.constant 0 : index
    %490 = vector.load %arg15[%c0_191, %c0_192] : memref<1x32xf32, #tpu.memory_space<vmem>>, vector<1x32xf32>
    %491 = vector.broadcast %490 : vector<1x32xf32> to vector<32x32xf32>
    %492 = arith.addf %489, %491 : vector<32x32xf32>
    %493 = math.tanh %492 : vector<32x32xf32>
    %c0_193 = arith.constant 0 : index
    %c0_194 = arith.constant 0 : index
    %494 = vector.load %arg16[%c0_193, %c0_194] : memref<1x32xbf16, #tpu.memory_space<vmem>>, vector<1x32xbf16>
    %495 = arith.truncf %493 : vector<32x32xf32> to vector<32x32xbf16>
    %cst_195 = arith.constant dense<0.000000e+00> : vector<1x32xf32>
    %496 = tpu.matmul %494, %495, %cst_195 {dimension_numbers = #tpu.dot_dimension_numbers<[1], [1], [0], [0], [0, 0, 1, 0], [], []>} : vector<1x32xbf16>, vector<32x32xbf16>, vector<1x32xf32> -> vector<1x32xf32>
    %c0_196 = arith.constant 0 : index
    %c0_197 = arith.constant 0 : index
    %497 = vector.load %arg17[%c0_196, %c0_197] : memref<1x1xf32, #tpu.memory_space<vmem>>, vector<1x1xf32>
    %498 = vector.broadcast %497 : vector<1x1xf32> to vector<1x32xf32>
    %499 = arith.addf %496, %498 : vector<1x32xf32>
    %c0_198 = arith.constant 0 : index
    %c0_199 = arith.constant 0 : index
    %500 = vector.load %arg18[%c0_198, %c0_199] : memref<1x32xf32, #tpu.memory_space<vmem>>, vector<1x32xf32>
    tpu.vector_store %arg18[%c0_198, %c0_199], %499 {strides = array<i32>} : memref<1x32xf32, #tpu.memory_space<vmem>>, vector<1x32xf32>,
    return
  }
}

</mosaic_0001>

<llo_original>
// kernel: tpu_custom_call.1
$region0: #{tpu_custom_call.1}
  #allocation0 [shape = 'u32[]', space=smem, size = 0x4, offset = 0x4, fixed_abs, tag = 'smem constant byte address 0x4 - core index']
  #allocation1 [shape = 'u32[144,128]{1,0:T(1,128)}', space=vmem, size = 0x12000, scoped, tag = 'internal scratch']
  #allocation2 [shape = 'f32[16,32]{1,0:T(8,128)}', space=vmem, size = 0x2000, scoped, tag = 'scratch operand']
  #allocation3 [shape = 'f32[16,32]{1,0:T(8,128)}', space=vmem, size = 0x2000, scoped, tag = 'scratch operand']
  #allocation4 [shape = 'f32[32,32]{1,0:T(8,128)}', space=vmem, size = 0x4000, scoped, tag = 'scratch operand']
  #allocation5 [shape = 'f32[1,1]{1,0:T(1,128)S(1)}', space=vmem, size = 0x200, scoped, tag = 'scoped memory for tpu_custom_call.1']
  %s0 = inlined_call_operand.hbm [shape: s32[32], index: 0, kind: input, shape index: {}]
  %s1 = inlined_call_operand.hbm [shape: s32[32], index: 1, kind: input, shape index: {}]
  %s2 = inlined_call_operand.hbm [shape: bf16[16,16], index: 2, kind: input, shape index: {}]
  %s3 = inlined_call_operand.hbm [shape: bf16[16,16], index: 3, kind: input, shape index: {}]
  %s4 = inlined_call_operand.vmem [shape: bf16[32,4], index: 4, kind: input, shape index: {}]
  %s5 = inlined_call_operand.hbm [shape: bf16[16,32], index: 5, kind: input, shape index: {}]
  %s6 = inlined_call_operand.hbm [shape: f32[1,32], index: 6, kind: input, shape index: {}]
  %s7 = inlined_call_operand.hbm [shape: bf16[3,32,32], index: 7, kind: input, shape index: {}]
  %s8 = inlined_call_operand.hbm [shape: bf16[3,32,32], index: 8, kind: input, shape index: {}]
  %s9 = inlined_call_operand.vmem [shape: f32[3,1,32], index: 9, kind: input, shape index: {}]
  %s10 = inlined_call_operand.vmem [shape: f32[3,1,32], index: 10, kind: input, shape index: {}]
  %s11 = inlined_call_operand.hbm [shape: f32[3,1,32], index: 11, kind: input, shape index: {}]
  %s12 = inlined_call_operand.vmem [shape: bf16[32,32], index: 12, kind: input, shape index: {}]
  %s13 = inlined_call_operand.vmem [shape: bf16[32,32], index: 13, kind: input, shape index: {}]
  %s14 = inlined_call_operand.vmem [shape: bf16[4,32], index: 14, kind: input, shape index: {}]
  %s15 = inlined_call_operand.vmem [shape: f32[1,32], index: 15, kind: input, shape index: {}]
  %s16 = inlined_call_operand.vmem [shape: bf16[1,32], index: 16, kind: input, shape index: {}]
  %s17 = inlined_call_operand.<no memory space> [shape: f32[1,1], index: 17, kind: input, shape index: {}]
  %s18 = inlined_call_operand.hbm [shape: f32[1,32], index: 18, kind: output, shape index: {}]
  %s19 = sld [smem:[#allocation0]]
  $region118: #{tpu_custom_call.1} parent=0
    _
  %s21 = ssub.s32 1, %s19
  %s22 = scalar_select 0, %s21, %s19
  %v23 = vstv %s17
  %24 = vst [vmem:[#allocation5] sm:$0x1] %v23
  $region1: #{tpu_custom_call.1} parent=0
    #allocation6 [shape = 'u8[512]{0}', space=smem, size = 0x200, scoped, tag = 'input window, operand 0, single buffered']
    #allocation7 [shape = 's32[1]{0}', space=sflag, size = 0x4, scoped, tag = 'scoped memory for tpu_custom_call.1']
    #allocation8 [shape = 's32[1]{0}', space=sflag, size = 0x4, scoped, tag = 'scoped memory for tpu_custom_call.1']
    #allocation9 [shape = 's32[1]{0}', space=sflag, size = 0x4, scoped, tag = 'scoped memory for tpu_custom_call.1']
    #allocation10 [shape = 'u8[512]{0}', space=smem, size = 0x200, scoped, tag = 'input window, operand 1, single buffered']
    #allocation11 [shape = 's32[1]{0}', space=sflag, size = 0x4, scoped, tag = 'scoped memory for tpu_custom_call.1']
    #allocation12 [shape = 'u8[4096]{0}', space=vmem, size = 0x1000, scoped, tag = 'input window, operand 2, single buffered']
    #allocation13 [shape = 'u8[4096]{0}', space=vmem, size = 0x1000, scoped, tag = 'input window, operand 3, single buffered']
    #allocation14 [shape = 's32[1]{0}', space=sflag, size = 0x4, scoped, tag = 'scoped memory for tpu_custom_call.1']
    #allocation15 [shape = 'u8[4096]{0}', space=vmem, size = 0x1000, scoped, tag = 'input window, operand 5, single buffered']
    #allocation16 [shape = 'u8[512]{0}', space=vmem, size = 0x400, scoped, tag = 'input window, operand 6, single buffered']
    #allocation17 [shape = 's32[1]{0}', space=sflag, size = 0x4, scoped, tag = 'scoped memory for tpu_custom_call.1']
    #allocation18 [shape = 'u8[24576]{0}', space=vmem, size = 0x6000, scoped, tag = 'input window, operand 7, single buffered']
    #allocation19 [shape = 'u8[24576]{0}', space=vmem, size = 0x6000, scoped, tag = 'input window, operand 8, single buffered']
    #allocation20 [shape = 's32[1]{0}', space=sflag, size = 0x4, scoped, tag = 'scoped memory for tpu_custom_call.1']
    #allocation21 [shape = 'u8[1536]{0}', space=vmem, size = 0x800, scoped, tag = 'input window, operand 11, single buffered']
    #allocation22 [shape = 'u8[512]{0}', space=vmem, size = 0x400, scoped, tag = 'output window, operand 0, single buffered']
    %25 = vsyncpa [#allocation9], 0
    %26 = vsyncpa [#allocation11], 0
    %27 = vsyncpa [#allocation7], 0
    %28 = vsyncpa [#allocation14], 0
    %29 = vsyncpa [#allocation17], 0
    %30 = vsyncpa [#allocation20], 0
    %31 = vsyncpa [#allocation8], 0
    // Predicated region
    $region2: #{tpu_custom_call.1} parent=1 // pred_check
      _
    $region3: #{tpu_custom_call.1} parent=1 // pred_check_branch
      %33 = sbr.rel (0) target = $region5
    $region4: #{tpu_custom_call.1} parent=1 // pred_region
      %s35 = ssub.s32 16, 16
      %36 = vsyncadd [#allocation9], %s35
      %39 = dma.hbm_to_smem %s0, 16, [#allocation6], [#allocation9]
    $region5: #{tpu_custom_call.1} parent=1 // pred_fallthru
      _
    // Predicated region
    $region6: #{tpu_custom_call.1} parent=1 // pred_check
      _
    $region7: #{tpu_custom_call.1} parent=1 // pred_check_branch
      %41 = sbr.rel (0) target = $region9
    $region8: #{tpu_custom_call.1} parent=1 // pred_region
      %s43 = ssub.s32 16, 16
      %44 = vsyncadd [#allocation11], %s43
      %47 = dma.hbm_to_smem %s1, 16, [#allocation10], [#allocation11]
    $region9: #{tpu_custom_call.1} parent=1 // pred_fallthru
      _
    // Predicated region
    $region10: #{tpu_custom_call.1} parent=1 // pred_check
      _
    $region11: #{tpu_custom_call.1} parent=1 // pred_check_branch
      %49 = sbr.rel (0) target = $region13
    $region12: #{tpu_custom_call.1} parent=1 // pred_region
      %s51 = ssub.s32 128, 128
      %52 = vsyncadd [#allocation7], %s51
      %s53 = sshll.u32 [#allocation12], 4
      %s54 = int_to_ptr.vmem [resolvable:$true] %s53
      %59 = dma.hbm_to_vmem [thread:$0]  %s2, 128, %s54, [#allocation7], 64, 64, 4
    $region13: #{tpu_custom_call.1} parent=1 // pred_fallthru
      _
    // Predicated region
    $region14: #{tpu_custom_call.1} parent=1 // pred_check
      _
    $region15: #{tpu_custom_call.1} parent=1 // pred_check_branch
      %61 = sbr.rel (0) target = $region17
    $region16: #{tpu_custom_call.1} parent=1 // pred_region
      %s63 = ssub.s32 128, 128
      %64 = vsyncadd [#allocation14], %s63
      %s65 = sshll.u32 [#allocation13], 4
      %s66 = int_to_ptr.vmem [resolvable:$true] %s65
      %71 = dma.hbm_to_vmem [thread:$0]  %s3, 128, %s66, [#allocation14], 64, 64, 4
    $region17: #{tpu_custom_call.1} parent=1 // pred_fallthru
      _
    // Predicated region
    $region18: #{tpu_custom_call.1} parent=1 // pred_check
      _
    $region19: #{tpu_custom_call.1} parent=1 // pred_check_branch
      %73 = sbr.rel (0) target = $region21
    $region20: #{tpu_custom_call.1} parent=1 // pred_region
      _
    $region21: #{tpu_custom_call.1} parent=1 // pred_fallthru
      _
    // Predicated region
    $region22: #{tpu_custom_call.1} parent=1 // pred_check
      _
    $region23: #{tpu_custom_call.1} parent=1 // pred_check_branch
      %75 = sbr.rel (0) target = $region25
    $region24: #{tpu_custom_call.1} parent=1 // pred_region
      %s77 = ssub.s32 128, 128
      %78 = vsyncadd [#allocation14], %s77
      %s79 = sshll.u32 [#allocation15], 4
      %s80 = int_to_ptr.vmem [resolvable:$true] %s79
      %85 = dma.hbm_to_vmem [thread:$0]  %s5, 128, %s80, [#allocation14], 64, 64, 4
    $region25: #{tpu_custom_call.1} parent=1 // pred_fallthru
      _
    // Predicated region
    $region26: #{tpu_custom_call.1} parent=1 // pred_check
      _
    $region27: #{tpu_custom_call.1} parent=1 // pred_check_branch
      %87 = sbr.rel (0) target = $region29
    $region28: #{tpu_custom_call.1} parent=1 // pred_region
      %s89 = ssub.s32 16, 16
      %90 = vsyncadd [#allocation17], %s89
      %s92 = sshll.u32 [#allocation16], 4
      %s93 = int_to_ptr.vmem [resolvable:$true] %s92
      %95 = dma.hbm_to_vmem [thread:$0]  %s6, 16, %s93, [#allocation17]
    $region29: #{tpu_custom_call.1} parent=1 // pred_fallthru
      _
    // Predicated region
    $region30: #{tpu_custom_call.1} parent=1 // pred_check
      _
    $region31: #{tpu_custom_call.1} parent=1 // pred_check_branch
      %97 = sbr.rel (0) target = $region33
    $region32: #{tpu_custom_call.1} parent=1 // pred_region
      %s99 = ssub.s32 768, 768
      %100 = vsyncadd [#allocation17], %s99
      %s101 = sshll.u32 [#allocation18], 4
      %s102 = int_to_ptr.vmem [resolvable:$true] %s101
      %107 = dma.hbm_to_vmem [thread:$0]  %s7, 768, %s102, [#allocation17], 64, 64, 4
    $region33: #{tpu_custom_call.1} parent=1 // pred_fallthru
      _
    // Predicated region
    $region34: #{tpu_custom_call.1} parent=1 // pred_check
      _
    $region35: #{tpu_custom_call.1} parent=1 // pred_check_branch
      %109 = sbr.rel (0) target = $region37
    $region36: #{tpu_custom_call.1} parent=1 // pred_region
      %s111 = ssub.s32 768, 768
      %112 = vsyncadd [#allocation20], %s111
      %s113 = sshll.u32 [#allocation19], 4
      %s114 = int_to_ptr.vmem [resolvable:$true] %s113
      %119 = dma.hbm_to_vmem [thread:$0]  %s8, 768, %s114, [#allocation20], 64, 64, 4
    $region37: #{tpu_custom_call.1} parent=1 // pred_fallthru
      _
    // Predicated region
    $region38: #{tpu_custom_call.1} parent=1 // pred_check
      _
    $region39: #{tpu_custom_call.1} parent=1 // pred_check_branch
      %121 = sbr.rel (0) target = $region41
    $region40: #{tpu_custom_call.1} parent=1 // pred_region
      _
    $region41: #{tpu_custom_call.1} parent=1 // pred_fallthru
      _
    // Predicated region
    $region42: #{tpu_custom_call.1} parent=1 // pred_check
      _
    $region43: #{tpu_custom_call.1} parent=1 // pred_check_branch
      %123 = sbr.rel (0) target = $region45
    $region44: #{tpu_custom_call.1} parent=1 // pred_region
      _
    $region45: #{tpu_custom_call.1} parent=1 // pred_fallthru
      _
    // Predicated region
    $region46: #{tpu_custom_call.1} parent=1 // pred_check
      _
    $region47: #{tpu_custom_call.1} parent=1 // pred_check_branch
      %125 = sbr.rel (0) target = $region49
    $region48: #{tpu_custom_call.1} parent=1 // pred_region
      %s127 = ssub.s32 48, 48
      %128 = vsyncadd [#allocation20], %s127
      %s129 = sshll.u32 [#allocation21], 4
      %s130 = int_to_ptr.vmem [resolvable:$true] %s129
      %135 = dma.hbm_to_vmem [thread:$0]  %s11, 48, %s130, [#allocation20], 16, 16, 1
    $region49: #{tpu_custom_call.1} parent=1 // pred_fallthru
      _
    // Predicated region
    $region50: #{tpu_custom_call.1} parent=1 // pred_check
      _
    $region51: #{tpu_custom_call.1} parent=1 // pred_check_branch
      %137 = sbr.rel (0) target = $region53
    $region52: #{tpu_custom_call.1} parent=1 // pred_region
      _
    $region53: #{tpu_custom_call.1} parent=1 // pred_fallthru
      _
    // Predicated region
    $region54: #{tpu_custom_call.1} parent=1 // pred_check
      _
    $region55: #{tpu_custom_call.1} parent=1 // pred_check_branch
      %139 = sbr.rel (0) target = $region57
    $region56: #{tpu_custom_call.1} parent=1 // pred_region
      _
    $region57: #{tpu_custom_call.1} parent=1 // pred_fallthru
      _
    // Predicated region
    $region58: #{tpu_custom_call.1} parent=1 // pred_check
      _
    $region59: #{tpu_custom_call.1} parent=1 // pred_check_branch
      %141 = sbr.rel (0) target = $region61
    $region60: #{tpu_custom_call.1} parent=1 // pred_region
      _
    $region61: #{tpu_custom_call.1} parent=1 // pred_fallthru
      _
    // Predicated region
    $region62: #{tpu_custom_call.1} parent=1 // pred_check
      _
    $region63: #{tpu_custom_call.1} parent=1 // pred_check_branch
      %143 = sbr.rel (0) target = $region65
    $region64: #{tpu_custom_call.1} parent=1 // pred_region
      _
    $region65: #{tpu_custom_call.1} parent=1 // pred_fallthru
      _
    // Predicated region
    $region66: #{tpu_custom_call.1} parent=1 // pred_check
      _
    $region67: #{tpu_custom_call.1} parent=1 // pred_check_branch
      %145 = sbr.rel (0) target = $region69
    $region68: #{tpu_custom_call.1} parent=1 // pred_region
      _
    $region69: #{tpu_custom_call.1} parent=1 // pred_fallthru
      _
    // Predicated region
    $region70: #{tpu_custom_call.1} parent=1 // pred_check
      _
    $region71: #{tpu_custom_call.1} parent=1 // pred_check_branch
      %147 = sbr.rel (0) target = $region73
    $region72: #{tpu_custom_call.1} parent=1 // pred_region
      _
    $region73: #{tpu_custom_call.1} parent=1 // pred_fallthru
      _
    // Predicated region
    $region74: #{tpu_custom_call.1} parent=1 // pred_check
      _
    $region75: #{tpu_custom_call.1} parent=1 // pred_check_branch
      %149 = sbr.rel (0) target = $region77
    $region76: #{tpu_custom_call.1} parent=1 // pred_region
      %150 = dma.done [#allocation9], 16
    $region77: #{tpu_custom_call.1} parent=1 // pred_fallthru
      _
    // Predicated region
    $region78: #{tpu_custom_call.1} parent=1 // pred_check
      _
    $region79: #{tpu_custom_call.1} parent=1 // pred_check_branch
      %152 = sbr.rel (0) target = $region81
    $region80: #{tpu_custom_call.1} parent=1 // pred_region
      %153 = dma.done [#allocation11], 16
    $region81: #{tpu_custom_call.1} parent=1 // pred_fallthru
      _
    // Predicated region
    $region82: #{tpu_custom_call.1} parent=1 // pred_check
      _
    $region83: #{tpu_custom_call.1} parent=1 // pred_check_branch
      %155 = sbr.rel (0) target = $region85
    $region84: #{tpu_custom_call.1} parent=1 // pred_region
      %156 = dma.done [#allocation7], 128
    $region85: #{tpu_custom_call.1} parent=1 // pred_fallthru
      _
    // Predicated region
    $region86: #{tpu_custom_call.1} parent=1 // pred_check
      _
    $region87: #{tpu_custom_call.1} parent=1 // pred_check_branch
      %158 = sbr.rel (0) target = $region89
    $region88: #{tpu_custom_call.1} parent=1 // pred_region
      %159 = dma.done [#allocation14], 128
    $region89: #{tpu_custom_call.1} parent=1 // pred_fallthru
      _
    // Predicated region
    $region90: #{tpu_custom_call.1} parent=1 // pred_check
      _
    $region91: #{tpu_custom_call.1} parent=1 // pred_check_branch
      %161 = sbr.rel (0) target = $region93
    $region92: #{tpu_custom_call.1} parent=1 // pred_region
      %162 = dma.done [#allocation14], 128
    $region93: #{tpu_custom_call.1} parent=1 // pred_fallthru
      _
    // Predicated region
    $region94: #{tpu_custom_call.1} parent=1 // pred_check
      _
    $region95: #{tpu_custom_call.1} parent=1 // pred_check_branch
      %164 = sbr.rel (0) target = $region97
    $region96: #{tpu_custom_call.1} parent=1 // pred_region
      %165 = dma.done [#allocation17], 16
    $region97: #{tpu_custom_call.1} parent=1 // pred_fallthru
      _
    // Predicated region
    $region98: #{tpu_custom_call.1} parent=1 // pred_check
      _
    $region99: #{tpu_custom_call.1} parent=1 // pred_check_branch
      %167 = sbr.rel (0) target = $region101
    $region100: #{tpu_custom_call.1} parent=1 // pred_region
      %168 = dma.done [#allocation17], 768
    $region101: #{tpu_custom_call.1} parent=1 // pred_fallthru
      _
    // Predicated region
    $region102: #{tpu_custom_call.1} parent=1 // pred_check
      _
    $region103: #{tpu_custom_call.1} parent=1 // pred_check_branch
      %170 = sbr.rel (0) target = $region105
    $region104: #{tpu_custom_call.1} parent=1 // pred_region
      %171 = dma.done [#allocation20], 768
    $region105: #{tpu_custom_call.1} parent=1 // pred_fallthru
      _
    // Predicated region
    $region106: #{tpu_custom_call.1} parent=1 // pred_check
      _
    $region107: #{tpu_custom_call.1} parent=1 // pred_check_branch
      %173 = sbr.rel (0) target = $region109
    $region108: #{tpu_custom_call.1} parent=1 // pred_region
      %174 = dma.done [#allocation20], 48
    $region109: #{tpu_custom_call.1} parent=1 // pred_fallthru
      _
    %175 = sfence
    %v177 = vld [vmem:[#allocation12] sm:$0xf]
    %v178 = vld [vmem:[#allocation12 + $0x4] sm:$0xf]
    %v179 = vld [vmem:[#allocation15] sm:$0xf]
    %v180 = vld [vmem:[#allocation15 + $0x4] sm:$0xf]
    %v181 = vld [vmem:[#allocation16] sm:$0x1]
    %v183 = vlaneseq
    %v184 = vshrl.u32 %v183, 7
    %v185 = vsub.s32 0, %v184
    %v186 = vrot.slane %v181, %v185
    %v190 = vunpack.c.l.b16 %v177
    %v191 = vunpack.c.l.b16 %v178
    %v192 = vpack.c.b16 %v191, %v190
    %v195 = vunpack.c.l.b16 %v179
    %v196 = vunpack.c.l.b16 %v180
    %v197 = vpack.c.b16 %v196, %v195
    %vm199 = vcmask 130048
    %v201 = vsel %vm199, %v192, 0
    %203 = vmatprep.subr.bf16.mxu0 0
    %204 = vmatpush1.bf16.msra.mxu0 0
    %205 = vmatprep.subr.bf16.mxu0 0
    %206 = vmatpush1.bf16.msra.mxu0 0
    %207 = vmatprep.subr.bf16.mxu0 0
    %208 = vmatpush1.bf16.msra.mxu0 0
    %209 = vmatprep.subr.bf16.mxu0 0
    %210 = vmatpush1.bf16.msra.mxu0 0
    %211 = vmatprep.subr.bf16.mxu0 0
    %212 = vmatpush1.bf16.msra.mxu0 0
    %213 = vmatprep.subr.bf16.mxu0 0
    %214 = vmatpush1.bf16.msra.mxu0 0
    %215 = vmatprep.subr.bf16.mxu0 0
    %216 = vmatpush1.bf16.msra.mxu0 0
    %217 = vmatprep.subr.bf16.mxu0 0
    %218 = vmatpush1.bf16.msra.mxu0 %v197
    %219 = vmatprep.subr.bf16.mxu0 0
    %220 = vmatpush2.bf16.msra.mxu0 0
    %221 = vmatprep.subr.bf16.mxu0 0
    %222 = vmatpush2.bf16.msra.mxu0 0
    %223 = vmatprep.subr.bf16.mxu0 0
    %224 = vmatpush2.bf16.msra.mxu0 0
    %225 = vmatprep.subr.bf16.mxu0 0
    %226 = vmatpush2.bf16.msra.mxu0 0
    %227 = vmatprep.subr.bf16.mxu0 0
    %228 = vmatpush2.bf16.msra.mxu0 0
    %229 = vmatprep.subr.bf16.mxu0 0
    %230 = vmatpush2.bf16.msra.mxu0 0
    %231 = vmatprep.subr.bf16.mxu0 0
    %232 = vmatpush2.bf16.msra.mxu0 0
    %233 = vmatprep.subr.bf16.mxu0 0
    %234 = vmatpush2.bf16.msra.mxu0 0
    %235 = vmatprep.mubr.bf16.mxu0 0
    %236 = vmatmul.mubr.bf16.gmra.mxu0 %v201
    %v237 = vpop.f32.mrf.mxu0
    %v238 = vadd.f32 %v186, %v237
    %v239 = vpop.f32.mrf.mxu0
    %v240 = vpop.f32.mrf.mxu0
    %v241 = vadd.f32 %v186, %v240
    %v242 = vpop.f32.mrf.mxu0
    %243 = vdwg.mxu0
    %v244 = vmax.f32 %v238, 0.0
    %v245 = vmax.f32 %v241, 0.0
    %v246 = vld [vmem:[#allocation13] sm:$0xf]
    %v247 = vld [vmem:[#allocation13 + $0x4] sm:$0xf]
    %v248 = vpack.c.bf16 %v245, %v244
    %v249 = vld [vmem:[#allocation18] sm:$0xf]
    %v250 = vld [vmem:[#allocation18 + $0x4] sm:$0xf]
    %v251 = vld [vmem:[#allocation18 + $0x8] sm:$0xf]
    %v252 = vld [vmem:[#allocation18 + $0xc] sm:$0xf]
    %v257 = vunpack.c.l.b16 %v249
    %v258 = vunpack.c.l.b16 %v250
    %v259 = vunpack.c.l.b16 %v251
    %v260 = vunpack.c.l.b16 %v252
    %v261 = vpack.c.b16 %v258, %v257
    %v262 = vpack.c.b16 %v260, %v259
    %vm265 = vcmask 261120
    %v267 = vsel %vm265, %v248, 0
    %269 = vmatprep.subr.bf16.mxu0 0
    %270 = vmatpush1.bf16.msra.mxu0 0
    %271 = vmatprep.subr.bf16.mxu0 0
    %272 = vmatpush1.bf16.msra.mxu0 0
    %273 = vmatprep.subr.bf16.mxu0 0
    %274 = vmatpush1.bf16.msra.mxu0 0
    %275 = vmatprep.subr.bf16.mxu0 0
    %276 = vmatpush1.bf16.msra.mxu0 0
    %277 = vmatprep.subr.bf16.mxu0 0
    %278 = vmatpush1.bf16.msra.mxu0 0
    %279 = vmatprep.subr.bf16.mxu0 0
    %280 = vmatpush1.bf16.msra.mxu0 0
    %281 = vmatprep.subr.bf16.mxu0 0
    %282 = vmatpush1.bf16.msra.mxu0 %v262
    %283 = vmatprep.subr.bf16.mxu0 0
    %284 = vmatpush1.bf16.msra.mxu0 %v261
    %285 = vmatprep.subr.bf16.mxu0 0
    %286 = vmatpush2.bf16.msra.mxu0 0
    %287 = vmatprep.subr.bf16.mxu0 0
    %288 = vmatpush2.bf16.msra.mxu0 0
    %289 = vmatprep.subr.bf16.mxu0 0
    %290 = vmatpush2.bf16.msra.mxu0 0
    %291 = vmatprep.subr.bf16.mxu0 0
    %292 = vmatpush2.bf16.msra.mxu0 0
    %293 = vmatprep.subr.bf16.mxu0 0
    %294 = vmatpush2.bf16.msra.mxu0 0
    %295 = vmatprep.subr.bf16.mxu0 0
    %296 = vmatpush2.bf16.msra.mxu0 0
    %297 = vmatprep.subr.bf16.mxu0 0
    %298 = vmatpush2.bf16.msra.mxu0 0
    %299 = vmatprep.subr.bf16.mxu0 0
    %300 = vmatpush2.bf16.msra.mxu0 0
    %301 = vmatprep.mubr.bf16.mxu0 0
    %302 = vmatmul.mubr.bf16.gmra.mxu0 %v267
    %v303 = vpop.f32.mrf.mxu0
    %v304 = vadd.f32 0.0, %v303
    %v305 = vpop.f32.mrf.mxu0
    %v306 = vpop.f32.mrf.mxu0
    %v307 = vadd.f32 0.0, %v306
    %v308 = vpop.f32.mrf.mxu0
    %309 = vdwg.mxu0
    %v310 = vld [vmem:[#allocation19] sm:$0xf]
    %v311 = vld [vmem:[#allocation19 + $0x4] sm:$0xf]
    %v312 = vld [vmem:[#allocation19 + $0x8] sm:$0xf]
    %v313 = vld [vmem:[#allocation19 + $0xc] sm:$0xf]
    %v318 = vunpack.c.l.b16 %v310
    %v319 = vunpack.c.l.b16 %v311
    %v320 = vunpack.c.l.b16 %v312
    %v321 = vunpack.c.l.b16 %v313
    %v322 = vpack.c.b16 %v319, %v318
    %v323 = vpack.c.b16 %v321, %v320
    %326 = vmatprep.subr.bf16.mxu0 0
    %327 = vmatpush1.bf16.msra.mxu0 0
    %328 = vmatprep.subr.bf16.mxu0 0
    %329 = vmatpush1.bf16.msra.mxu0 0
    %330 = vmatprep.subr.bf16.mxu0 0
    %331 = vmatpush1.bf16.msra.mxu0 0
    %332 = vmatprep.subr.bf16.mxu0 0
    %333 = vmatpush1.bf16.msra.mxu0 0
    %334 = vmatprep.subr.bf16.mxu0 0
    %335 = vmatpush1.bf16.msra.mxu0 0
    %336 = vmatprep.subr.bf16.mxu0 0
    %337 = vmatpush1.bf16.msra.mxu0 0
    %338 = vmatprep.subr.bf16.mxu0 0
    %339 = vmatpush1.bf16.msra.mxu0 %v323
    %340 = vmatprep.subr.bf16.mxu0 0
    %341 = vmatpush1.bf16.msra.mxu0 %v322
    %342 = vmatprep.subr.bf16.mxu0 0
    %343 = vmatpush2.bf16.msra.mxu0 0
    %344 = vmatprep.subr.bf16.mxu0 0
    %345 = vmatpush2.bf16.msra.mxu0 0
    %346 = vmatprep.subr.bf16.mxu0 0
    %347 = vmatpush2.bf16.msra.mxu0 0
    %348 = vmatprep.subr.bf16.mxu0 0
    %349 = vmatpush2.bf16.msra.mxu0 0
    %350 = vmatprep.subr.bf16.mxu0 0
    %351 = vmatpush2.bf16.msra.mxu0 0
    %352 = vmatprep.subr.bf16.mxu0 0
    %353 = vmatpush2.bf16.msra.mxu0 0
    %354 = vmatprep.subr.bf16.mxu0 0
    %355 = vmatpush2.bf16.msra.mxu0 0
    %356 = vmatprep.subr.bf16.mxu0 0
    %357 = vmatpush2.bf16.msra.mxu0 0
    %358 = vmatprep.mubr.bf16.mxu0 0
    %359 = vmatmul.mubr.bf16.gmra.mxu0 %v267
    %v360 = vpop.f32.mrf.mxu0
    %v361 = vadd.f32 0.0, %v360
    %v362 = vpop.f32.mrf.mxu0
    %v363 = vpop.f32.mrf.mxu0
    %v364 = vadd.f32 0.0, %v363
    %v365 = vpop.f32.mrf.mxu0
    %366 = vdwg.mxu0
    %v367 = vpack.c.bf16 %v307, %v304
    %v370 = vunpack.c.l.b16 %v246
    %v371 = vunpack.c.l.b16 %v247
    %v372 = vpack.c.b16 %v371, %v370
    %v374 = vsel %vm199, %v372, 0
    %376 = vmatprep.subr.bf16.mxu0 0
    %377 = vmatpush1.bf16.msra.mxu0 0
    %378 = vmatprep.subr.bf16.mxu0 0
    %379 = vmatpush1.bf16.msra.mxu0 0
    %380 = vmatprep.subr.bf16.mxu0 0
    %381 = vmatpush1.bf16.msra.mxu0 0
    %382 = vmatprep.subr.bf16.mxu0 0
    %383 = vmatpush1.bf16.msra.mxu0 0
    %384 = vmatprep.subr.bf16.mxu0 0
    %385 = vmatpush1.bf16.msra.mxu0 0
    %386 = vmatprep.subr.bf16.mxu0 0
    %387 = vmatpush1.bf16.msra.mxu0 0
    %388 = vmatprep.subr.bf16.mxu0 0
    %389 = vmatpush1.bf16.msra.mxu0 0
    %390 = vmatprep.subr.bf16.mxu0 0
    %391 = vmatpush1.bf16.msra.mxu0 %v367
    %392 = vmatprep.subr.bf16.mxu0 0
    %393 = vmatpush2.bf16.msra.mxu0 0
    %394 = vmatprep.subr.bf16.mxu0 0
    %395 = vmatpush2.bf16.msra.mxu0 0
    %396 = vmatprep.subr.bf16.mxu0 0
    %397 = vmatpush2.bf16.msra.mxu0 0
    %398 = vmatprep.subr.bf16.mxu0 0
    %399 = vmatpush2.bf16.msra.mxu0 0
    %400 = vmatprep.subr.bf16.mxu0 0
    %401 = vmatpush2.bf16.msra.mxu0 0
    %402 = vmatprep.subr.bf16.mxu0 0
    %403 = vmatpush2.bf16.msra.mxu0 0
    %404 = vmatprep.subr.bf16.mxu0 0
    %405 = vmatpush2.bf16.msra.mxu0 0
    %406 = vmatprep.subr.bf16.mxu0 0
    %407 = vmatpush2.bf16.msra.mxu0 0
    %408 = vmatprep.mubr.bf16.mxu0 0
    %409 = vmatmul.mubr.bf16.gmra.mxu0 %v374
    %v410 = vpop.f32.mrf.mxu0
    %v411 = vadd.f32 %v361, %v410
    %v412 = vpop.f32.mrf.mxu0
    %v413 = vpop.f32.mrf.mxu0
    %v414 = vadd.f32 %v364, %v413
    %v415 = vpop.f32.mrf.mxu0
    %416 = vdwg.mxu0
    %v417 = vld [vmem:[%s9] sm:$0x1]
    %v419 = vlaneseq
    %v420 = vshrl.u32 %v419, 7
    %v421 = vsub.s32 0, %v420
    %v422 = vrot.slane %v417, %v421
    %v424 = vadd.f32 %v411, %v422
    %v425 = vadd.f32 %v414, %v422
    %v426 = vmax.f32 %v424, 0.0
    %v427 = vmax.f32 %v425, 0.0
    %v428 = vsel %vm265, %v426, 0.0
    %v429 = vsel %vm265, %v427, 0.0
    %v430 = vadd.f32 %v428, %v429
    %v431 = vrot.slane %v430, 4
    %v432 = vadd.f32 %v430, %v431
    %v433 = vrot.slane %v432, 2
    %v434 = vadd.f32 %v432, %v433
    %v435 = vrot.slane %v434, 1
    %v436 = vadd.f32 %v434, %v435
    %v437 = vmul.f32 %v436, 0.0625
    %v438 = vsub.f32 %v426, %v437
    %v439 = vsub.f32 %v427, %v437
    %v440 = vmul.f32 %v438, %v438
    %v441 = vmul.f32 %v439, %v439
    %v442 = vsel %vm265, %v440, 0.0
    %v443 = vsel %vm265, %v441, 0.0
    %v444 = vadd.f32 %v442, %v443
    %v445 = vrot.slane %v444, 4
    %v446 = vadd.f32 %v444, %v445
    %v447 = vrot.slane %v446, 2
    %v448 = vadd.f32 %v446, %v447
    %v449 = vrot.slane %v448, 1
    %v450 = vadd.f32 %v448, %v449
    %v451 = vmul.f32 %v450, 0.0625
    %v452 = vld [vmem:[%s10] sm:$0x1]
    %v453 = vadd.f32 %v451, 1e-05
    %v454 = vrsqrt.pop %v453
    %v455 = vmul.f32 %v452, %v454
    %v457 = vlaneseq
    %v458 = vshrl.u32 %v457, 7
    %v459 = vsub.s32 0, %v458
    %v460 = vrot.slane %v455, %v459
    %v462 = vmul.f32 %v438, %v460
    %v463 = vmul.f32 %v439, %v460
    %v464 = vld [vmem:[#allocation21] sm:$0x1]
    %v466 = vlaneseq
    %v467 = vshrl.u32 %v466, 7
    %v468 = vsub.s32 0, %v467
    %v469 = vrot.slane %v464, %v468
    %v471 = vadd.f32 %v462, %v469
    %v472 = vadd.f32 %v463, %v469
    %v473 = vpack.c.bf16 %v472, %v471
    %s474 = scalar_lea.vmem [#allocation18], 16
    %v475 = vld [vmem:[%s474] sm:$0xf]
    %v476 = vld [vmem:[%s474 + $0x4] sm:$0xf]
    %v477 = vld [vmem:[%s474 + $0x8] sm:$0xf]
    %v478 = vld [vmem:[%s474 + $0xc] sm:$0xf]
    %v483 = vunpack.c.l.b16 %v475
    %v484 = vunpack.c.l.b16 %v476
    %v485 = vunpack.c.l.b16 %v477
    %v486 = vunpack.c.l.b16 %v478
    %v487 = vpack.c.b16 %v484, %v483
    %v488 = vpack.c.b16 %v486, %v485
    %v492 = vsel %vm265, %v473, 0
    %494 = vmatprep.subr.bf16.mxu0 0
    %495 = vmatpush1.bf16.msra.mxu0 0
    %496 = vmatprep.subr.bf16.mxu0 0
    %497 = vmatpush1.bf16.msra.mxu0 0
    %498 = vmatprep.subr.bf16.mxu0 0
    %499 = vmatpush1.bf16.msra.mxu0 0
    %500 = vmatprep.subr.bf16.mxu0 0
    %501 = vmatpush1.bf16.msra.mxu0 0
    %502 = vmatprep.subr.bf16.mxu0 0
    %503 = vmatpush1.bf16.msra.mxu0 0
    %504 = vmatprep.subr.bf16.mxu0 0
    %505 = vmatpush1.bf16.msra.mxu0 0
    %506 = vmatprep.subr.bf16.mxu0 0
    %507 = vmatpush1.bf16.msra.mxu0 %v488
    %508 = vmatprep.subr.bf16.mxu0 0
    %509 = vmatpush1.bf16.msra.mxu0 %v487
    %510 = vmatprep.subr.bf16.mxu0 0
    %511 = vmatpush2.bf16.msra.mxu0 0
    %512 = vmatprep.subr.bf16.mxu0 0
    %513 = vmatpush2.bf16.msra.mxu0 0
    %514 = vmatprep.subr.bf16.mxu0 0
    %515 = vmatpush2.bf16.msra.mxu0 0
    %516 = vmatprep.subr.bf16.mxu0 0
    %517 = vmatpush2.bf16.msra.mxu0 0
    %518 = vmatprep.subr.bf16.mxu0 0
    %519 = vmatpush2.bf16.msra.mxu0 0
    %520 = vmatprep.subr.bf16.mxu0 0
    %521 = vmatpush2.bf16.msra.mxu0 0
    %522 = vmatprep.subr.bf16.mxu0 0
    %523 = vmatpush2.bf16.msra.mxu0 0
    %524 = vmatprep.subr.bf16.mxu0 0
    %525 = vmatpush2.bf16.msra.mxu0 0
    %526 = vmatprep.mubr.bf16.mxu0 0
    %527 = vmatmul.mubr.bf16.gmra.mxu0 %v492
    %v528 = vpop.f32.mrf.mxu0
    %v529 = vadd.f32 0.0, %v528
    %v530 = vpop.f32.mrf.mxu0
    %v531 = vpop.f32.mrf.mxu0
    %v532 = vadd.f32 0.0, %v531
    %v533 = vpop.f32.mrf.mxu0
    %534 = vdwg.mxu0
    %s535 = scalar_lea.vmem [#allocation19], 16
    %v536 = vld [vmem:[%s535] sm:$0xf]
    %v537 = vld [vmem:[%s535 + $0x4] sm:$0xf]
    %v538 = vld [vmem:[%s535 + $0x8] sm:$0xf]
    %v539 = vld [vmem:[%s535 + $0xc] sm:$0xf]
    %v544 = vunpack.c.l.b16 %v536
    %v545 = vunpack.c.l.b16 %v537
    %v546 = vunpack.c.l.b16 %v538
    %v547 = vunpack.c.l.b16 %v539
    %v548 = vpack.c.b16 %v545, %v544
    %v549 = vpack.c.b16 %v547, %v546
    %552 = vmatprep.subr.bf16.mxu0 0
    %553 = vmatpush1.bf16.msra.mxu0 0
    %554 = vmatprep.subr.bf16.mxu0 0
    %555 = vmatpush1.bf16.msra.mxu0 0
    %556 = vmatprep.subr.bf16.mxu0 0
    %557 = vmatpush1.bf16.msra.mxu0 0
    %558 = vmatprep.subr.bf16.mxu0 0
    %559 = vmatpush1.bf16.msra.mxu0 0
    %560 = vmatprep.subr.bf16.mxu0 0
    %561 = vmatpush1.bf16.msra.mxu0 0
    %562 = vmatprep.subr.bf16.mxu0 0
    %563 = vmatpush1.bf16.msra.mxu0 0
    %564 = vmatprep.subr.bf16.mxu0 0
    %565 = vmatpush1.bf16.msra.mxu0 %v549
    %566 = vmatprep.subr.bf16.mxu0 0
    %567 = vmatpush1.bf16.msra.mxu0 %v548
    %568 = vmatprep.subr.bf16.mxu0 0
    %569 = vmatpush2.bf16.msra.mxu0 0
    %570 = vmatprep.subr.bf16.mxu0 0
    %571 = vmatpush2.bf16.msra.mxu0 0
    %572 = vmatprep.subr.bf16.mxu0 0
    %573 = vmatpush2.bf16.msra.mxu0 0
    %574 = vmatprep.subr.bf16.mxu0 0
    %575 = vmatpush2.bf16.msra.mxu0 0
    %576 = vmatprep.subr.bf16.mxu0 0
    %577 = vmatpush2.bf16.msra.mxu0 0
    %578 = vmatprep.subr.bf16.mxu0 0
    %579 = vmatpush2.bf16.msra.mxu0 0
    %580 = vmatprep.subr.bf16.mxu0 0
    %581 = vmatpush2.bf16.msra.mxu0 0
    %582 = vmatprep.subr.bf16.mxu0 0
    %583 = vmatpush2.bf16.msra.mxu0 0
    %584 = vmatprep.mubr.bf16.mxu0 0
    %585 = vmatmul.mubr.bf16.gmra.mxu0 %v492
    %v586 = vpop.f32.mrf.mxu0
    %v587 = vadd.f32 0.0, %v586
    %v588 = vpop.f32.mrf.mxu0
    %v589 = vpop.f32.mrf.mxu0
    %v590 = vadd.f32 0.0, %v589
    %v591 = vpop.f32.mrf.mxu0
    %592 = vdwg.mxu0
    %v593 = vpack.c.bf16 %v532, %v529
    %594 = vmatprep.subr.bf16.mxu0 0
    %595 = vmatpush1.bf16.msra.mxu0 0
    %596 = vmatprep.subr.bf16.mxu0 0
    %597 = vmatpush1.bf16.msra.mxu0 0
    %598 = vmatprep.subr.bf16.mxu0 0
    %599 = vmatpush1.bf16.msra.mxu0 0
    %600 = vmatprep.subr.bf16.mxu0 0
    %601 = vmatpush1.bf16.msra.mxu0 0
    %602 = vmatprep.subr.bf16.mxu0 0
    %603 = vmatpush1.bf16.msra.mxu0 0
    %604 = vmatprep.subr.bf16.mxu0 0
    %605 = vmatpush1.bf16.msra.mxu0 0
    %606 = vmatprep.subr.bf16.mxu0 0
    %607 = vmatpush1.bf16.msra.mxu0 0
    %608 = vmatprep.subr.bf16.mxu0 0
    %609 = vmatpush1.bf16.msra.mxu0 %v593
    %610 = vmatprep.subr.bf16.mxu0 0
    %611 = vmatpush2.bf16.msra.mxu0 0
    %612 = vmatprep.subr.bf16.mxu0 0
    %613 = vmatpush2.bf16.msra.mxu0 0
    %614 = vmatprep.subr.bf16.mxu0 0
    %615 = vmatpush2.bf16.msra.mxu0 0
    %616 = vmatprep.subr.bf16.mxu0 0
    %617 = vmatpush2.bf16.msra.mxu0 0
    %618 = vmatprep.subr.bf16.mxu0 0
    %619 = vmatpush2.bf16.msra.mxu0 0
    %620 = vmatprep.subr.bf16.mxu0 0
    %621 = vmatpush2.bf16.msra.mxu0 0
    %622 = vmatprep.subr.bf16.mxu0 0
    %623 = vmatpush2.bf16.msra.mxu0 0
    %624 = vmatprep.subr.bf16.mxu0 0
    %625 = vmatpush2.bf16.msra.mxu0 0
    %626 = vmatprep.mubr.bf16.mxu0 0
    %627 = vmatmul.mubr.bf16.gmra.mxu0 %v374
    %v628 = vpop.f32.mrf.mxu0
    %v629 = vadd.f32 %v587, %v628
    %v630 = vpop.f32.mrf.mxu0
    %v631 = vpop.f32.mrf.mxu0
    %v632 = vadd.f32 %v590, %v631
    %v633 = vpop.f32.mrf.mxu0
    %634 = vdwg.mxu0
    %s635 = scalar_lea.vmem %s9, 1
    %v636 = vld [vmem:[%s635] sm:$0x1]
    %v638 = vlaneseq
    %v639 = vshrl.u32 %v638, 7
    %v640 = vsub.s32 0, %v639
    %v641 = vrot.slane %v636, %v640
    %v643 = vadd.f32 %v629, %v641
    %v644 = vadd.f32 %v632, %v641
    %v645 = vmax.f32 %v643, 0.0
    %v646 = vmax.f32 %v644, 0.0
    %v647 = vsel %vm265, %v645, 0.0
    %v648 = vsel %vm265, %v646, 0.0
    %v649 = vadd.f32 %v647, %v648
    %v650 = vrot.slane %v649, 4
    %v651 = vadd.f32 %v649, %v650
    %v652 = vrot.slane %v651, 2
    %v653 = vadd.f32 %v651, %v652
    %v654 = vrot.slane %v653, 1
    %v655 = vadd.f32 %v653, %v654
    %v656 = vmul.f32 %v655, 0.0625
    %v657 = vsub.f32 %v645, %v656
    %v658 = vsub.f32 %v646, %v656
    %v659 = vmul.f32 %v657, %v657
    %v660 = vmul.f32 %v658, %v658
    %v661 = vsel %vm265, %v659, 0.0
    %v662 = vsel %vm265, %v660, 0.0
    %v663 = vadd.f32 %v661, %v662
    %v664 = vrot.slane %v663, 4
    %v665 = vadd.f32 %v663, %v664
    %v666 = vrot.slane %v665, 2
    %v667 = vadd.f32 %v665, %v666
    %v668 = vrot.slane %v667, 1
    %v669 = vadd.f32 %v667, %v668
    %v670 = vmul.f32 %v669, 0.0625
    %s671 = scalar_lea.vmem %s10, 1
    %v672 = vld [vmem:[%s671] sm:$0x1]
    %v673 = vadd.f32 %v670, 1e-05
    %v674 = vrsqrt.pop %v673
    %v675 = vmul.f32 %v672, %v674
    %v677 = vlaneseq
    %v678 = vshrl.u32 %v677, 7
    %v679 = vsub.s32 0, %v678
    %v680 = vrot.slane %v675, %v679
    %v682 = vmul.f32 %v657, %v680
    %v683 = vmul.f32 %v658, %v680
    %s684 = scalar_lea.vmem [#allocation21], 1
    %v685 = vld [vmem:[%s684] sm:$0x1]
    %v687 = vlaneseq
    %v688 = vshrl.u32 %v687, 7
    %v689 = vsub.s32 0, %v688
    %v690 = vrot.slane %v685, %v689
    %v692 = vadd.f32 %v682, %v690
    %v693 = vadd.f32 %v683, %v690
    %v694 = vpack.c.bf16 %v693, %v692
    %s695 = scalar_lea.vmem [#allocation18], 32
    %v696 = vld [vmem:[%s695] sm:$0xf]
    %v697 = vld [vmem:[%s695 + $0x4] sm:$0xf]
    %v698 = vld [vmem:[%s695 + $0x8] sm:$0xf]
    %v699 = vld [vmem:[%s695 + $0xc] sm:$0xf]
    %v704 = vunpack.c.l.b16 %v696
    %v705 = vunpack.c.l.b16 %v697
    %v706 = vunpack.c.l.b16 %v698
    %v707 = vunpack.c.l.b16 %v699
    %v708 = vpack.c.b16 %v705, %v704
    %v709 = vpack.c.b16 %v707, %v706
    %v713 = vsel %vm265, %v694, 0
    %715 = vmatprep.subr.bf16.mxu0 0
    %716 = vmatpush1.bf16.msra.mxu0 0
    %717 = vmatprep.subr.bf16.mxu0 0
    %718 = vmatpush1.bf16.msra.mxu0 0
    %719 = vmatprep.subr.bf16.mxu0 0
    %720 = vmatpush1.bf16.msra.mxu0 0
    %721 = vmatprep.subr.bf16.mxu0 0
    %722 = vmatpush1.bf16.msra.mxu0 0
    %723 = vmatprep.subr.bf16.mxu0 0
    %724 = vmatpush1.bf16.msra.mxu0 0
    %725 = vmatprep.subr.bf16.mxu0 0
    %726 = vmatpush1.bf16.msra.mxu0 0
    %727 = vmatprep.subr.bf16.mxu0 0
    %728 = vmatpush1.bf16.msra.mxu0 %v709
    %729 = vmatprep.subr.bf16.mxu0 0
    %730 = vmatpush1.bf16.msra.mxu0 %v708
    %731 = vmatprep.subr.bf16.mxu0 0
    %732 = vmatpush2.bf16.msra.mxu0 0
    %733 = vmatprep.subr.bf16.mxu0 0
    %734 = vmatpush2.bf16.msra.mxu0 0
    %735 = vmatprep.subr.bf16.mxu0 0
    %736 = vmatpush2.bf16.msra.mxu0 0
    %737 = vmatprep.subr.bf16.mxu0 0
    %738 = vmatpush2.bf16.msra.mxu0 0
    %739 = vmatprep.subr.bf16.mxu0 0
    %740 = vmatpush2.bf16.msra.mxu0 0
    %741 = vmatprep.subr.bf16.mxu0 0
    %742 = vmatpush2.bf16.msra.mxu0 0
    %743 = vmatprep.subr.bf16.mxu0 0
    %744 = vmatpush2.bf16.msra.mxu0 0
    %745 = vmatprep.subr.bf16.mxu0 0
    %746 = vmatpush2.bf16.msra.mxu0 0
    %747 = vmatprep.mubr.bf16.mxu0 0
    %748 = vmatmul.mubr.bf16.gmra.mxu0 %v713
    %v749 = vpop.f32.mrf.mxu0
    %v750 = vadd.f32 0.0, %v749
    %v751 = vpop.f32.mrf.mxu0
    %v752 = vpop.f32.mrf.mxu0
    %v753 = vadd.f32 0.0, %v752
    %v754 = vpop.f32.mrf.mxu0
    %755 = vdwg.mxu0
    %s756 = scalar_lea.vmem [#allocation19], 32
    %v757 = vld [vmem:[%s756] sm:$0xf]
    %v758 = vld [vmem:[%s756 + $0x4] sm:$0xf]
    %v759 = vld [vmem:[%s756 + $0x8] sm:$0xf]
    %v760 = vld [vmem:[%s756 + $0xc] sm:$0xf]
    %v765 = vunpack.c.l.b16 %v757
    %v766 = vunpack.c.l.b16 %v758
    %v767 = vunpack.c.l.b16 %v759
    %v768 = vunpack.c.l.b16 %v760
    %v769 = vpack.c.b16 %v766, %v765
    %v770 = vpack.c.b16 %v768, %v767
    %773 = vmatprep.subr.bf16.mxu0 0
    %774 = vmatpush1.bf16.msra.mxu0 0
    %775 = vmatprep.subr.bf16.mxu0 0
    %776 = vmatpush1.bf16.msra.mxu0 0
    %777 = vmatprep.subr.bf16.mxu0 0
    %778 = vmatpush1.bf16.msra.mxu0 0
    %779 = vmatprep.subr.bf16.mxu0 0
    %780 = vmatpush1.bf16.msra.mxu0 0
    %781 = vmatprep.subr.bf16.mxu0 0
    %782 = vmatpush1.bf16.msra.mxu0 0
    %783 = vmatprep.subr.bf16.mxu0 0
    %784 = vmatpush1.bf16.msra.mxu0 0
    %785 = vmatprep.subr.bf16.mxu0 0
    %786 = vmatpush1.bf16.msra.mxu0 %v770
    %787 = vmatprep.subr.bf16.mxu0 0
    %788 = vmatpush1.bf16.msra.mxu0 %v769
    %789 = vmatprep.subr.bf16.mxu0 0
    %790 = vmatpush2.bf16.msra.mxu0 0
    %791 = vmatprep.subr.bf16.mxu0 0
    %792 = vmatpush2.bf16.msra.mxu0 0
    %793 = vmatprep.subr.bf16.mxu0 0
    %794 = vmatpush2.bf16.msra.mxu0 0
    %795 = vmatprep.subr.bf16.mxu0 0
    %796 = vmatpush2.bf16.msra.mxu0 0
    %797 = vmatprep.subr.bf16.mxu0 0
    %798 = vmatpush2.bf16.msra.mxu0 0
    %799 = vmatprep.subr.bf16.mxu0 0
    %800 = vmatpush2.bf16.msra.mxu0 0
    %801 = vmatprep.subr.bf16.mxu0 0
    %802 = vmatpush2.bf16.msra.mxu0 0
    %803 = vmatprep.subr.bf16.mxu0 0
    %804 = vmatpush2.bf16.msra.mxu0 0
    %805 = vmatprep.mubr.bf16.mxu0 0
    %806 = vmatmul.mubr.bf16.gmra.mxu0 %v713
    %v807 = vpop.f32.mrf.mxu0
    %v808 = vadd.f32 0.0, %v807
    %v809 = vpop.f32.mrf.mxu0
    %v810 = vpop.f32.mrf.mxu0
    %v811 = vadd.f32 0.0, %v810
    %v812 = vpop.f32.mrf.mxu0
    %813 = vdwg.mxu0
    %v814 = vpack.c.bf16 %v753, %v750
    %815 = vmatprep.subr.bf16.mxu0 0
    %816 = vmatpush1.bf16.msra.mxu0 0
    %817 = vmatprep.subr.bf16.mxu0 0
    %818 = vmatpush1.bf16.msra.mxu0 0
    %819 = vmatprep.subr.bf16.mxu0 0
    %820 = vmatpush1.bf16.msra.mxu0 0
    %821 = vmatprep.subr.bf16.mxu0 0
    %822 = vmatpush1.bf16.msra.mxu0 0
    %823 = vmatprep.subr.bf16.mxu0 0
    %824 = vmatpush1.bf16.msra.mxu0 0
    %825 = vmatprep.subr.bf16.mxu0 0
    %826 = vmatpush1.bf16.msra.mxu0 0
    %827 = vmatprep.subr.bf16.mxu0 0
    %828 = vmatpush1.bf16.msra.mxu0 0
    %829 = vmatprep.subr.bf16.mxu0 0
    %830 = vmatpush1.bf16.msra.mxu0 %v814
    %831 = vmatprep.subr.bf16.mxu0 0
    %832 = vmatpush2.bf16.msra.mxu0 0
    %833 = vmatprep.subr.bf16.mxu0 0
    %834 = vmatpush2.bf16.msra.mxu0 0
    %835 = vmatprep.subr.bf16.mxu0 0
    %836 = vmatpush2.bf16.msra.mxu0 0
    %837 = vmatprep.subr.bf16.mxu0 0
    %838 = vmatpush2.bf16.msra.mxu0 0
    %839 = vmatprep.subr.bf16.mxu0 0
    %840 = vmatpush2.bf16.msra.mxu0 0
    %841 = vmatprep.subr.bf16.mxu0 0
    %842 = vmatpush2.bf16.msra.mxu0 0
    %843 = vmatprep.subr.bf16.mxu0 0
    %844 = vmatpush2.bf16.msra.mxu0 0
    %845 = vmatprep.subr.bf16.mxu0 0
    %846 = vmatpush2.bf16.msra.mxu0 0
    %847 = vmatprep.mubr.bf16.mxu0 0
    %848 = vmatmul.mubr.bf16.gmra.mxu0 %v374
    %v849 = vpop.f32.mrf.mxu0
    %v850 = vadd.f32 %v808, %v849
    %v851 = vpop.f32.mrf.mxu0
    %v852 = vpop.f32.mrf.mxu0
    %v853 = vadd.f32 %v811, %v852
    %v854 = vpop.f32.mrf.mxu0
    %855 = vdwg.mxu0
    %s856 = scalar_lea.vmem %s9, 2
    %v857 = vld [vmem:[%s856] sm:$0x1]
    %v859 = vlaneseq
    %v860 = vshrl.u32 %v859, 7
    %v861 = vsub.s32 0, %v860
    %v862 = vrot.slane %v857, %v861
    %v864 = vadd.f32 %v850, %v862
    %v865 = vadd.f32 %v853, %v862
    %v866 = vmax.f32 %v864, 0.0
    %v867 = vmax.f32 %v865, 0.0
    %v868 = vsel %vm265, %v866, 0.0
    %v869 = vsel %vm265, %v867, 0.0
    %v870 = vadd.f32 %v868, %v869
    %v871 = vrot.slane %v870, 4
    %v872 = vadd.f32 %v870, %v871
    %v873 = vrot.slane %v872, 2
    %v874 = vadd.f32 %v872, %v873
    %v875 = vrot.slane %v874, 1
    %v876 = vadd.f32 %v874, %v875
    %v877 = vmul.f32 %v876, 0.0625
    %v878 = vsub.f32 %v866, %v877
    %v879 = vsub.f32 %v867, %v877
    %v880 = vmul.f32 %v878, %v878
    %v881 = vmul.f32 %v879, %v879
    %v882 = vsel %vm265, %v880, 0.0
    %v883 = vsel %vm265, %v881, 0.0
    %v884 = vadd.f32 %v882, %v883
    %v885 = vrot.slane %v884, 4
    %v886 = vadd.f32 %v884, %v885
    %v887 = vrot.slane %v886, 2
    %v888 = vadd.f32 %v886, %v887
    %v889 = vrot.slane %v888, 1
    %v890 = vadd.f32 %v888, %v889
    %v891 = vmul.f32 %v890, 0.0625
    %s892 = scalar_lea.vmem %s10, 2
    %v893 = vld [vmem:[%s892] sm:$0x1]
    %v894 = vadd.f32 %v891, 1e-05
    %v895 = vrsqrt.pop %v894
    %v896 = vmul.f32 %v893, %v895
    %v898 = vlaneseq
    %v899 = vshrl.u32 %v898, 7
    %v900 = vsub.s32 0, %v899
    %v901 = vrot.slane %v896, %v900
    %v903 = vmul.f32 %v878, %v901
    %v904 = vmul.f32 %v879, %v901
    %s905 = scalar_lea.vmem [#allocation21], 2
    %v906 = vld [vmem:[%s905] sm:$0x1]
    %v908 = vlaneseq
    %v909 = vshrl.u32 %v908, 7
    %v910 = vsub.s32 0, %v909
    %v911 = vrot.slane %v906, %v910
    %v913 = vadd.f32 %v903, %v911
    %v914 = vadd.f32 %v904, %v911
    %v915 = vpack.c.bf16 %v914, %v913
    %v916 = vld [vmem:[%s12] sm:$0xf]
    %v917 = vld [vmem:[%s12 + $0x4] sm:$0xf]
    %v918 = vld [vmem:[%s12 + $0x8] sm:$0xf]
    %v919 = vld [vmem:[%s12 + $0xc] sm:$0xf]
    %v924 = vunpack.c.l.b16 %v916
    %v925 = vunpack.c.l.b16 %v917
    %v926 = vunpack.c.l.b16 %v918
    %v927 = vunpack.c.l.b16 %v919
    %v928 = vpack.c.b16 %v925, %v924
    %v929 = vpack.c.b16 %v927, %v926
    %v933 = vsel %vm265, %v915, 0
    %935 = vmatprep.subr.bf16.mxu0 0
    %936 = vmatpush1.bf16.msra.mxu0 0
    %937 = vmatprep.subr.bf16.mxu0 0
    %938 = vmatpush1.bf16.msra.mxu0 0
    %939 = vmatprep.subr.bf16.mxu0 0
    %940 = vmatpush1.bf16.msra.mxu0 0
    %941 = vmatprep.subr.bf16.mxu0 0
    %942 = vmatpush1.bf16.msra.mxu0 0
    %943 = vmatprep.subr.bf16.mxu0 0
    %944 = vmatpush1.bf16.msra.mxu0 0
    %945 = vmatprep.subr.bf16.mxu0 0
    %946 = vmatpush1.bf16.msra.mxu0 0
    %947 = vmatprep.subr.bf16.mxu0 0
    %948 = vmatpush1.bf16.msra.mxu0 %v929
    %949 = vmatprep.subr.bf16.mxu0 0
    %950 = vmatpush1.bf16.msra.mxu0 %v928
    %951 = vmatprep.subr.bf16.mxu0 0
    %952 = vmatpush2.bf16.msra.mxu0 0
    %953 = vmatprep.subr.bf16.mxu0 0
    %954 = vmatpush2.bf16.msra.mxu0 0
    %955 = vmatprep.subr.bf16.mxu0 0
    %956 = vmatpush2.bf16.msra.mxu0 0
    %957 = vmatprep.subr.bf16.mxu0 0
    %958 = vmatpush2.bf16.msra.mxu0 0
    %959 = vmatprep.subr.bf16.mxu0 0
    %960 = vmatpush2.bf16.msra.mxu0 0
    %961 = vmatprep.subr.bf16.mxu0 0
    %962 = vmatpush2.bf16.msra.mxu0 0
    %963 = vmatprep.subr.bf16.mxu0 0
    %964 = vmatpush2.bf16.msra.mxu0 0
    %965 = vmatprep.subr.bf16.mxu0 0
    %966 = vmatpush2.bf16.msra.mxu0 0
    %967 = vmatprep.mubr.bf16.mxu0 0
    %968 = vmatmul.mubr.bf16.gmra.mxu0 %v933
    %v969 = vpop.f32.mrf.mxu0
    %v970 = vadd.f32 0.0, %v969
    %v971 = vpop.f32.mrf.mxu0
    %v972 = vpop.f32.mrf.mxu0
    %v973 = vadd.f32 0.0, %v972
    %v974 = vpop.f32.mrf.mxu0
    %975 = vdwg.mxu0
    %976 = vst.msk [vmem:[#allocation2] sm:$0xff] %vm265, %v970
    %977 = vst.msk [vmem:[#allocation2 + $0x8] sm:$0xff] %vm265, %v973
    %v978 = vld [vmem:[%s13] sm:$0xf]
    %v979 = vld [vmem:[%s13 + $0x4] sm:$0xf]
    %v980 = vld [vmem:[%s13 + $0x8] sm:$0xf]
    %v981 = vld [vmem:[%s13 + $0xc] sm:$0xf]
    %v986 = vunpack.c.l.b16 %v978
    %v987 = vunpack.c.l.b16 %v979
    %v988 = vunpack.c.l.b16 %v980
    %v989 = vunpack.c.l.b16 %v981
    %v990 = vpack.c.b16 %v987, %v986
    %v991 = vpack.c.b16 %v989, %v988
    %994 = vmatprep.subr.bf16.mxu0 0
    %995 = vmatpush1.bf16.msra.mxu0 0
    %996 = vmatprep.subr.bf16.mxu0 0
    %997 = vmatpush1.bf16.msra.mxu0 0
    %998 = vmatprep.subr.bf16.mxu0 0
    %999 = vmatpush1.bf16.msra.mxu0 0
    %1000 = vmatprep.subr.bf16.mxu0 0
    %1001 = vmatpush1.bf16.msra.mxu0 0
    %1002 = vmatprep.subr.bf16.mxu0 0
    %1003 = vmatpush1.bf16.msra.mxu0 0
    %1004 = vmatprep.subr.bf16.mxu0 0
    %1005 = vmatpush1.bf16.msra.mxu0 0
    %1006 = vmatprep.subr.bf16.mxu0 0
    %1007 = vmatpush1.bf16.msra.mxu0 %v991
    %1008 = vmatprep.subr.bf16.mxu0 0
    %1009 = vmatpush1.bf16.msra.mxu0 %v990
    %1010 = vmatprep.subr.bf16.mxu0 0
    %1011 = vmatpush2.bf16.msra.mxu0 0
    %1012 = vmatprep.subr.bf16.mxu0 0
    %1013 = vmatpush2.bf16.msra.mxu0 0
    %1014 = vmatprep.subr.bf16.mxu0 0
    %1015 = vmatpush2.bf16.msra.mxu0 0
    %1016 = vmatprep.subr.bf16.mxu0 0
    %1017 = vmatpush2.bf16.msra.mxu0 0
    %1018 = vmatprep.subr.bf16.mxu0 0
    %1019 = vmatpush2.bf16.msra.mxu0 0
    %1020 = vmatprep.subr.bf16.mxu0 0
    %1021 = vmatpush2.bf16.msra.mxu0 0
    %1022 = vmatprep.subr.bf16.mxu0 0
    %1023 = vmatpush2.bf16.msra.mxu0 0
    %1024 = vmatprep.subr.bf16.mxu0 0
    %1025 = vmatpush2.bf16.msra.mxu0 0
    %1026 = vmatprep.mubr.bf16.mxu0 0
    %1027 = vmatmul.mubr.bf16.gmra.mxu0 %v933
    %v1028 = vpop.f32.mrf.mxu0
    %v1029 = vadd.f32 0.0, %v1028
    %v1030 = vpop.f32.mrf.mxu0
    %v1031 = vpop.f32.mrf.mxu0
    %v1032 = vadd.f32 0.0, %v1031
    %v1033 = vpop.f32.mrf.mxu0
    %1034 = vdwg.mxu0
    %1035 = vst.msk [vmem:[#allocation3] sm:$0xff] %vm265, %v1029
    %1036 = vst.msk [vmem:[#allocation3 + $0x8] sm:$0xff] %vm265, %v1032
    %s1037 = sld [smem:[#allocation6]]
    %s1038 = sld [smem:[#allocation10]]
    %s1039 = scalar_lea.vmem [#allocation2], %s1037
    %v1040 = vld [vmem:[%s1039] sm:$0x1]
    %s1041 = scalar_lea.vmem [#allocation3], %s1038
    %v1042 = vld [vmem:[%s1041] sm:$0x1]
    %v1043 = vadd.f32 %v1040, %v1042
    %vm1044 = vcmask 253952
    %1045 = vst.msk [vmem:[#allocation4] sm:$0x1] %vm1044, %v1043
    %s1046 = sld [smem:[#allocation6 + $0x1]]
    %s1047 = sld [smem:[#allocation10 + $0x1]]
    %s1048 = scalar_lea.vmem [#allocation2], %s1046
    %v1049 = vld [vmem:[%s1048] sm:$0x1]
    %s1050 = scalar_lea.vmem [#allocation3], %s1047
    %v1051 = vld [vmem:[%s1050] sm:$0x1]
    %v1052 = vadd.f32 %v1049, %v1051
    %1053 = vst.msk [vmem:[#allocation4 + $0x1] sm:$0x1] %vm1044, %v1052
    %s1054 = sld [smem:[#allocation6 + $0x2]]
    %s1055 = sld [smem:[#allocation10 + $0x2]]
    %s1056 = scalar_lea.vmem [#allocation2], %s1054
    %v1057 = vld [vmem:[%s1056] sm:$0x1]
    %s1058 = scalar_lea.vmem [#allocation3], %s1055
    %v1059 = vld [vmem:[%s1058] sm:$0x1]
    %v1060 = vadd.f32 %v1057, %v1059
    %1061 = vst.msk [vmem:[#allocation4 + $0x2] sm:$0x1] %vm1044, %v1060
    %s1062 = sld [smem:[#allocation6 + $0x3]]
    %s1063 = sld [smem:[#allocation10 + $0x3]]
    %s1064 = scalar_lea.vmem [#allocation2], %s1062
    %v1065 = vld [vmem:[%s1064] sm:$0x1]
    %s1066 = scalar_lea.vmem [#allocation3], %s1063
    %v1067 = vld [vmem:[%s1066] sm:$0x1]
    %v1068 = vadd.f32 %v1065, %v1067
    %1069 = vst.msk [vmem:[#allocation4 + $0x3] sm:$0x1] %vm1044, %v1068
    %s1070 = sld [smem:[#allocation6 + $0x4]]
    %s1071 = sld [smem:[#allocation10 + $0x4]]
    %s1072 = scalar_lea.vmem [#allocation2], %s1070
    %v1073 = vld [vmem:[%s1072] sm:$0x1]
    %s1074 = scalar_lea.vmem [#allocation3], %s1071
    %v1075 = vld [vmem:[%s1074] sm:$0x1]
    %v1076 = vadd.f32 %v1073, %v1075
    %1077 = vst.msk [vmem:[#allocation4 + $0x4] sm:$0x1] %vm1044, %v1076
    %s1078 = sld [smem:[#allocation6 + $0x5]]
    %s1079 = sld [smem:[#allocation10 + $0x5]]
    %s1080 = scalar_lea.vmem [#allocation2], %s1078
    %v1081 = vld [vmem:[%s1080] sm:$0x1]
    %s1082 = scalar_lea.vmem [#allocation3], %s1079
    %v1083 = vld [vmem:[%s1082] sm:$0x1]
    %v1084 = vadd.f32 %v1081, %v1083
    %1085 = vst.msk [vmem:[#allocation4 + $0x5] sm:$0x1] %vm1044, %v1084
    %s1086 = sld [smem:[#allocation6 + $0x6]]
    %s1087 = sld [smem:[#allocation10 + $0x6]]
    %s1088 = scalar_lea.vmem [#allocation2], %s1086
    %v1089 = vld [vmem:[%s1088] sm:$0x1]
    %s1090 = scalar_lea.vmem [#allocation3], %s1087
    %v1091 = vld [vmem:[%s1090] sm:$0x1]
    %v1092 = vadd.f32 %v1089, %v1091
    %1093 = vst.msk [vmem:[#allocation4 + $0x6] sm:$0x1] %vm1044, %v1092
    %s1094 = sld [smem:[#allocation6 + $0x7]]
    %s1095 = sld [smem:[#allocation10 + $0x7]]
    %s1096 = scalar_lea.vmem [#allocation2], %s1094
    %v1097 = vld [vmem:[%s1096] sm:$0x1]
    %s1098 = scalar_lea.vmem [#allocation3], %s1095
    %v1099 = vld [vmem:[%s1098] sm:$0x1]
    %v1100 = vadd.f32 %v1097, %v1099
    %1101 = vst.msk [vmem:[#allocation4 + $0x7] sm:$0x1] %vm1044, %v1100
    %s1102 = sld [smem:[#allocation6 + $0x8]]
    %s1103 = sld [smem:[#allocation10 + $0x8]]
    %s1104 = scalar_lea.vmem [#allocation2], %s1102
    %v1105 = vld [vmem:[%s1104] sm:$0x1]
    %s1106 = scalar_lea.vmem [#allocation3], %s1103
    %v1107 = vld [vmem:[%s1106] sm:$0x1]
    %v1108 = vadd.f32 %v1105, %v1107
    %1109 = vst.msk [vmem:[#allocation4 + $0x8] sm:$0x1] %vm1044, %v1108
    %s1110 = sld [smem:[#allocation6 + $0x9]]
    %s1111 = sld [smem:[#allocation10 + $0x9]]
    %s1112 = scalar_lea.vmem [#allocation2], %s1110
    %v1113 = vld [vmem:[%s1112] sm:$0x1]
    %s1114 = scalar_lea.vmem [#allocation3], %s1111
    %v1115 = vld [vmem:[%s1114] sm:$0x1]
    %v1116 = vadd.f32 %v1113, %v1115
    %1117 = vst.msk [vmem:[#allocation4 + $0x9] sm:$0x1] %vm1044, %v1116
    %s1118 = sld [smem:[#allocation6 + $0xa]]
    %s1119 = sld [smem:[#allocation10 + $0xa]]
    %s1120 = scalar_lea.vmem [#allocation2], %s1118
    %v1121 = vld [vmem:[%s1120] sm:$0x1]
    %s1122 = scalar_lea.vmem [#allocation3], %s1119
    %v1123 = vld [vmem:[%s1122] sm:$0x1]
    %v1124 = vadd.f32 %v1121, %v1123
    %1125 = vst.msk [vmem:[#allocation4 + $0xa] sm:$0x1] %vm1044, %v1124
    %s1126 = sld [smem:[#allocation6 + $0xb]]
    %s1127 = sld [smem:[#allocation10 + $0xb]]
    %s1128 = scalar_lea.vmem [#allocation2], %s1126
    %v1129 = vld [vmem:[%s1128] sm:$0x1]
    %s1130 = scalar_lea.vmem [#allocation3], %s1127
    %v1131 = vld [vmem:[%s1130] sm:$0x1]
    %v1132 = vadd.f32 %v1129, %v1131
    %1133 = vst.msk [vmem:[#allocation4 + $0xb] sm:$0x1] %vm1044, %v1132
    %s1134 = sld [smem:[#allocation6 + $0xc]]
    %s1135 = sld [smem:[#allocation10 + $0xc]]
    %s1136 = scalar_lea.vmem [#allocation2], %s1134
    %v1137 = vld [vmem:[%s1136] sm:$0x1]
    %s1138 = scalar_lea.vmem [#allocation3], %s1135
    %v1139 = vld [vmem:[%s1138] sm:$0x1]
    %v1140 = vadd.f32 %v1137, %v1139
    %1141 = vst.msk [vmem:[#allocation4 + $0xc] sm:$0x1] %vm1044, %v1140
    %s1142 = sld [smem:[#allocation6 + $0xd]]
    %s1143 = sld [smem:[#allocation10 + $0xd]]
    %s1144 = scalar_lea.vmem [#allocation2], %s1142
    %v1145 = vld [vmem:[%s1144] sm:$0x1]
    %s1146 = scalar_lea.vmem [#allocation3], %s1143
    %v1147 = vld [vmem:[%s1146] sm:$0x1]
    %v1148 = vadd.f32 %v1145, %v1147
    %1149 = vst.msk [vmem:[#allocation4 + $0xd] sm:$0x1] %vm1044, %v1148
    %s1150 = sld [smem:[#allocation6 + $0xe]]
    %s1151 = sld [smem:[#allocation10 + $0xe]]
    %s1152 = scalar_lea.vmem [#allocation2], %s1150
    %v1153 = vld [vmem:[%s1152] sm:$0x1]
    %s1154 = scalar_lea.vmem [#allocation3], %s1151
    %v1155 = vld [vmem:[%s1154] sm:$0x1]
    %v1156 = vadd.f32 %v1153, %v1155
    %1157 = vst.msk [vmem:[#allocation4 + $0xe] sm:$0x1] %vm1044, %v1156
    %s1158 = sld [smem:[#allocation6 + $0xf]]
    %s1159 = sld [smem:[#allocation10 + $0xf]]
    %s1160 = scalar_lea.vmem [#allocation2], %s1158
    %v1161 = vld [vmem:[%s1160] sm:$0x1]
    %s1162 = scalar_lea.vmem [#allocation3], %s1159
    %v1163 = vld [vmem:[%s1162] sm:$0x1]
    %v1164 = vadd.f32 %v1161, %v1163
    %1165 = vst.msk [vmem:[#allocation4 + $0xf] sm:$0x1] %vm1044, %v1164
    %s1166 = sld [smem:[#allocation6 + $0x10]]
    %s1167 = sld [smem:[#allocation10 + $0x10]]
    %s1168 = scalar_lea.vmem [#allocation2], %s1166
    %v1169 = vld [vmem:[%s1168] sm:$0x1]
    %s1170 = scalar_lea.vmem [#allocation3], %s1167
    %v1171 = vld [vmem:[%s1170] sm:$0x1]
    %v1172 = vadd.f32 %v1169, %v1171
    %1173 = vst.msk [vmem:[#allocation4 + $0x10] sm:$0x1] %vm1044, %v1172
    %s1174 = sld [smem:[#allocation6 + $0x11]]
    %s1175 = sld [smem:[#allocation10 + $0x11]]
    %s1176 = scalar_lea.vmem [#allocation2], %s1174
    %v1177 = vld [vmem:[%s1176] sm:$0x1]
    %s1178 = scalar_lea.vmem [#allocation3], %s1175
    %v1179 = vld [vmem:[%s1178] sm:$0x1]
    %v1180 = vadd.f32 %v1177, %v1179
    %1181 = vst.msk [vmem:[#allocation4 + $0x11] sm:$0x1] %vm1044, %v1180
    %s1182 = sld [smem:[#allocation6 + $0x12]]
    %s1183 = sld [smem:[#allocation10 + $0x12]]
    %s1184 = scalar_lea.vmem [#allocation2], %s1182
    %v1185 = vld [vmem:[%s1184] sm:$0x1]
    %s1186 = scalar_lea.vmem [#allocation3], %s1183
    %v1187 = vld [vmem:[%s1186] sm:$0x1]
    %v1188 = vadd.f32 %v1185, %v1187
    %1189 = vst.msk [vmem:[#allocation4 + $0x12] sm:$0x1] %vm1044, %v1188
    %s1190 = sld [smem:[#allocation6 + $0x13]]
    %s1191 = sld [smem:[#allocation10 + $0x13]]
    %s1192 = scalar_lea.vmem [#allocation2], %s1190
    %v1193 = vld [vmem:[%s1192] sm:$0x1]
    %s1194 = scalar_lea.vmem [#allocation3], %s1191
    %v1195 = vld [vmem:[%s1194] sm:$0x1]
    %v1196 = vadd.f32 %v1193, %v1195
    %1197 = vst.msk [vmem:[#allocation4 + $0x13] sm:$0x1] %vm1044, %v1196
    %s1198 = sld [smem:[#allocation6 + $0x14]]
    %s1199 = sld [smem:[#allocation10 + $0x14]]
    %s1200 = scalar_lea.vmem [#allocation2], %s1198
    %v1201 = vld [vmem:[%s1200] sm:$0x1]
    %s1202 = scalar_lea.vmem [#allocation3], %s1199
    %v1203 = vld [vmem:[%s1202] sm:$0x1]
    %v1204 = vadd.f32 %v1201, %v1203
    %1205 = vst.msk [vmem:[#allocation4 + $0x14] sm:$0x1] %vm1044, %v1204
    %s1206 = sld [smem:[#allocation6 + $0x15]]
    %s1207 = sld [smem:[#allocation10 + $0x15]]
    %s1208 = scalar_lea.vmem [#allocation2], %s1206
    %v1209 = vld [vmem:[%s1208] sm:$0x1]
    %s1210 = scalar_lea.vmem [#allocation3], %s1207
    %v1211 = vld [vmem:[%s1210] sm:$0x1]
    %v1212 = vadd.f32 %v1209, %v1211
    %1213 = vst.msk [vmem:[#allocation4 + $0x15] sm:$0x1] %vm1044, %v1212
    %s1214 = sld [smem:[#allocation6 + $0x16]]
    %s1215 = sld [smem:[#allocation10 + $0x16]]
    %s1216 = scalar_lea.vmem [#allocation2], %s1214
    %v1217 = vld [vmem:[%s1216] sm:$0x1]
    %s1218 = scalar_lea.vmem [#allocation3], %s1215
    %v1219 = vld [vmem:[%s1218] sm:$0x1]
    %v1220 = vadd.f32 %v1217, %v1219
    %1221 = vst.msk [vmem:[#allocation4 + $0x16] sm:$0x1] %vm1044, %v1220
    %s1222 = sld [smem:[#allocation6 + $0x17]]
    %s1223 = sld [smem:[#allocation10 + $0x17]]
    %s1224 = scalar_lea.vmem [#allocation2], %s1222
    %v1225 = vld [vmem:[%s1224] sm:$0x1]
    %s1226 = scalar_lea.vmem [#allocation3], %s1223
    %v1227 = vld [vmem:[%s1226] sm:$0x1]
    %v1228 = vadd.f32 %v1225, %v1227
    %1229 = vst.msk [vmem:[#allocation4 + $0x17] sm:$0x1] %vm1044, %v1228
    %s1230 = sld [smem:[#allocation6 + $0x18]]
    %s1231 = sld [smem:[#allocation10 + $0x18]]
    %s1232 = scalar_lea.vmem [#allocation2], %s1230
    %v1233 = vld [vmem:[%s1232] sm:$0x1]
    %s1234 = scalar_lea.vmem [#allocation3], %s1231
    %v1235 = vld [vmem:[%s1234] sm:$0x1]
    %v1236 = vadd.f32 %v1233, %v1235
    %1237 = vst.msk [vmem:[#allocation4 + $0x18] sm:$0x1] %vm1044, %v1236
    %s1238 = sld [smem:[#allocation6 + $0x19]]
    %s1239 = sld [smem:[#allocation10 + $0x19]]
    %s1240 = scalar_lea.vmem [#allocation2], %s1238
    %v1241 = vld [vmem:[%s1240] sm:$0x1]
    %s1242 = scalar_lea.vmem [#allocation3], %s1239
    %v1243 = vld [vmem:[%s1242] sm:$0x1]
    %v1244 = vadd.f32 %v1241, %v1243
    %1245 = vst.msk [vmem:[#allocation4 + $0x19] sm:$0x1] %vm1044, %v1244
    %s1246 = sld [smem:[#allocation6 + $0x1a]]
    %s1247 = sld [smem:[#allocation10 + $0x1a]]
    %s1248 = scalar_lea.vmem [#allocation2], %s1246
    %v1249 = vld [vmem:[%s1248] sm:$0x1]
    %s1250 = scalar_lea.vmem [#allocation3], %s1247
    %v1251 = vld [vmem:[%s1250] sm:$0x1]
    %v1252 = vadd.f32 %v1249, %v1251
    %1253 = vst.msk [vmem:[#allocation4 + $0x1a] sm:$0x1] %vm1044, %v1252
    %s1254 = sld [smem:[#allocation6 + $0x1b]]
    %s1255 = sld [smem:[#allocation10 + $0x1b]]
    %s1256 = scalar_lea.vmem [#allocation2], %s1254
    %v1257 = vld [vmem:[%s1256] sm:$0x1]
    %s1258 = scalar_lea.vmem [#allocation3], %s1255
    %v1259 = vld [vmem:[%s1258] sm:$0x1]
    %v1260 = vadd.f32 %v1257, %v1259
    %1261 = vst.msk [vmem:[#allocation4 + $0x1b] sm:$0x1] %vm1044, %v1260
    %s1262 = sld [smem:[#allocation6 + $0x1c]]
    %s1263 = sld [smem:[#allocation10 + $0x1c]]
    %s1264 = scalar_lea.vmem [#allocation2], %s1262
    %v1265 = vld [vmem:[%s1264] sm:$0x1]
    %s1266 = scalar_lea.vmem [#allocation3], %s1263
    %v1267 = vld [vmem:[%s1266] sm:$0x1]
    %v1268 = vadd.f32 %v1265, %v1267
    %1269 = vst.msk [vmem:[#allocation4 + $0x1c] sm:$0x1] %vm1044, %v1268
    %s1270 = sld [smem:[#allocation6 + $0x1d]]
    %s1271 = sld [smem:[#allocation10 + $0x1d]]
    %s1272 = scalar_lea.vmem [#allocation2], %s1270
    %v1273 = vld [vmem:[%s1272] sm:$0x1]
    %s1274 = scalar_lea.vmem [#allocation3], %s1271
    %v1275 = vld [vmem:[%s1274] sm:$0x1]
    %v1276 = vadd.f32 %v1273, %v1275
    %1277 = vst.msk [vmem:[#allocation4 + $0x1d] sm:$0x1] %vm1044, %v1276
    %s1278 = sld [smem:[#allocation6 + $0x1e]]
    %s1279 = sld [smem:[#allocation10 + $0x1e]]
    %s1280 = scalar_lea.vmem [#allocation2], %s1278
    %v1281 = vld [vmem:[%s1280] sm:$0x1]
    %s1282 = scalar_lea.vmem [#allocation3], %s1279
    %v1283 = vld [vmem:[%s1282] sm:$0x1]
    %v1284 = vadd.f32 %v1281, %v1283
    %1285 = vst.msk [vmem:[#allocation4 + $0x1e] sm:$0x1] %vm1044, %v1284
    %s1286 = sld [smem:[#allocation6 + $0x1f]]
    %s1287 = sld [smem:[#allocation10 + $0x1f]]
    %s1288 = scalar_lea.vmem [#allocation2], %s1286
    %v1289 = vld [vmem:[%s1288] sm:$0x1]
    %s1290 = scalar_lea.vmem [#allocation3], %s1287
    %v1291 = vld [vmem:[%s1290] sm:$0x1]
    %v1292 = vadd.f32 %v1289, %v1291
    %1293 = vst.msk [vmem:[#allocation4 + $0x1f] sm:$0x1] %vm1044, %v1292
    %v1294 = vld [vmem:[#allocation4] sm:$0xff]
    %v1295 = vld [vmem:[#allocation4 + $0x8] sm:$0xff]
    %v1296 = vld [vmem:[#allocation4 + $0x10] sm:$0xff]
    %v1297 = vld [vmem:[#allocation4 + $0x18] sm:$0xff]
    %v1298 = vld [vmem:[%s4] sm:$0xf]
    %v1299 = vld [vmem:[%s4 + $0x4] sm:$0xf]
    %v1300 = vld [vmem:[%s4 + $0x8] sm:$0xf]
    %v1301 = vld [vmem:[%s4 + $0xc] sm:$0xf]
    %v1302 = vld [vmem:[%s14] sm:$0x3]
    %v1307 = vunpack.c.l.b16 %v1298
    %v1308 = vunpack.c.l.b16 %v1299
    %v1309 = vunpack.c.l.b16 %v1300
    %v1310 = vunpack.c.l.b16 %v1301
    %v1311 = vpack.c.b16 %v1308, %v1307
    %v1312 = vpack.c.b16 %v1310, %v1309
    %vm1313 = vcmask 31744
    %v1315 = vsel %vm1313, %v1311, 0
    %v1318 = vsel %vm1313, %v1312, 0
    %vm1320 = vcmask 1041408
    %v1322 = vsel %vm1320, %v1302, 0
    %1324 = vmatprep.subr.bf16.mxu0 0
    %1325 = vmatpush1.bf16.msra.mxu0 0
    %1326 = vmatprep.subr.bf16.mxu0 0
    %1327 = vmatpush1.bf16.msra.mxu0 0
    %1328 = vmatprep.subr.bf16.mxu0 0
    %1329 = vmatpush1.bf16.msra.mxu0 0
    %1330 = vmatprep.subr.bf16.mxu0 0
    %1331 = vmatpush1.bf16.msra.mxu0 0
    %1332 = vmatprep.subr.bf16.mxu0 0
    %1333 = vmatpush1.bf16.msra.mxu0 0
    %1334 = vmatprep.subr.bf16.mxu0 0
    %1335 = vmatpush1.bf16.msra.mxu0 0
    %1336 = vmatprep.subr.bf16.mxu0 0
    %1337 = vmatpush1.bf16.msra.mxu0 0
    %1338 = vmatprep.subr.bf16.mxu0 0
    %1339 = vmatpush1.bf16.msra.mxu0 %v1322
    %1340 = vmatprep.subr.bf16.mxu0 0
    %1341 = vmatpush2.bf16.msra.mxu0 0
    %1342 = vmatprep.subr.bf16.mxu0 0
    %1343 = vmatpush2.bf16.msra.mxu0 0
    %1344 = vmatprep.subr.bf16.mxu0 0
    %1345 = vmatpush2.bf16.msra.mxu0 0
    %1346 = vmatprep.subr.bf16.mxu0 0
    %1347 = vmatpush2.bf16.msra.mxu0 0
    %1348 = vmatprep.subr.bf16.mxu0 0
    %1349 = vmatpush2.bf16.msra.mxu0 0
    %1350 = vmatprep.subr.bf16.mxu0 0
    %1351 = vmatpush2.bf16.msra.mxu0 0
    %1352 = vmatprep.subr.bf16.mxu0 0
    %1353 = vmatpush2.bf16.msra.mxu0 0
    %1354 = vmatprep.subr.bf16.mxu0 0
    %1355 = vmatpush2.bf16.msra.mxu0 0
    %1356 = vmatprep.mubr.bf16.mxu0 0
    %1357 = vmatmul.mubr.bf16.gmra.mxu0 %v1315
    %v1358 = vpop.f32.mrf.mxu0
    %v1359 = vadd.f32 0.0, %v1358
    %v1360 = vpop.f32.mrf.mxu0
    %v1361 = vpop.f32.mrf.mxu0
    %v1362 = vadd.f32 0.0, %v1361
    %v1363 = vpop.f32.mrf.mxu0
    %1364 = vmatprep.mubr.bf16.mxu0 0
    %1365 = vmatmul.mubr.bf16.gmra.mxu0 %v1318
    %v1366 = vpop.f32.mrf.mxu0
    %v1367 = vadd.f32 0.0, %v1366
    %v1368 = vpop.f32.mrf.mxu0
    %v1369 = vpop.f32.mrf.mxu0
    %v1370 = vadd.f32 0.0, %v1369
    %v1371 = vpop.f32.mrf.mxu0
    %1372 = vdwg.mxu0
    %v1373 = vadd.f32 %v1294, %v1359
    %v1374 = vadd.f32 %v1295, %v1362
    %v1375 = vadd.f32 %v1296, %v1367
    %v1376 = vadd.f32 %v1297, %v1370
    %v1377 = vld [vmem:[%s15] sm:$0x1]
    %v1379 = vlaneseq
    %v1380 = vshrl.u32 %v1379, 7
    %v1381 = vsub.s32 0, %v1380
    %v1382 = vrot.slane %v1377, %v1381
    %v1384 = vadd.f32 %v1373, %v1382
    %v1385 = vadd.f32 %v1374, %v1382
    %v1386 = vadd.f32 %v1375, %v1382
    %v1387 = vadd.f32 %v1376, %v1382
    %v1388 = vtanh.pop %v1384
    %v1389 = vtanh.pop %v1385
    %v1390 = vtanh.pop %v1386
    %v1391 = vtanh.pop %v1387
    %v1392 = vld [vmem:[%s16] sm:$0x1]
    %v1393 = vpack.c.bf16 %v1389, %v1388
    %v1394 = vpack.c.bf16 %v1391, %v1390
    %v1395 = vld [vmem:[#allocation5] sm:$0x1]
    %1397 = vset.pattern.permute.xlu0 0
    %1398 = vperm.xlu0 %1397, %v1395
    %v1399 = vpop.permute.xlu0 %1398
    %v1401 = vlaneseq
    %v1402 = vshrl.u32 %v1401, 7
    %v1403 = vsub.s32 0, %v1402
    %v1404 = vrot.slane %v1399, %v1403
    %v1406 = vsel %vm265, %v1392, 0
    %v1409 = vsel %vm265, %v1393, 0
    %v1412 = vsel %vm265, %v1394, 0
    %1414 = vmatprep.subr.bf16.mxu0 0
    %1415 = vmatpush1.bf16.xpose.msra.mxu0 0
    %1416 = vmatprep.subr.bf16.mxu0 0
    %1417 = vmatpush1.bf16.xpose.msra.mxu0 0
    %1418 = vmatprep.subr.bf16.mxu0 0
    %1419 = vmatpush1.bf16.xpose.msra.mxu0 0
    %1420 = vmatprep.subr.bf16.mxu0 0
    %1421 = vmatpush1.bf16.xpose.msra.mxu0 0
    %1422 = vmatprep.subr.bf16.mxu0 0
    %1423 = vmatpush1.bf16.xpose.msra.mxu0 0
    %1424 = vmatprep.subr.bf16.mxu0 0
    %1425 = vmatpush1.bf16.xpose.msra.mxu0 0
    %1426 = vmatprep.subr.bf16.mxu0 0
    %1427 = vmatpush1.bf16.xpose.msra.mxu0 %v1412
    %1428 = vmatprep.subr.bf16.mxu0 0
    %1429 = vmatpush1.bf16.xpose.msra.mxu0 %v1409
    %1430 = vmatprep.subr.bf16.mxu0 0
    %1431 = vmatpush2.bf16.xpose.msra.mxu0 0
    %1432 = vmatprep.subr.bf16.mxu0 0
    %1433 = vmatpush2.bf16.xpose.msra.mxu0 0
    %1434 = vmatprep.subr.bf16.mxu0 0
    %1435 = vmatpush2.bf16.xpose.msra.mxu0 0
    %1436 = vmatprep.subr.bf16.mxu0 0
    %1437 = vmatpush2.bf16.xpose.msra.mxu0 0
    %1438 = vmatprep.subr.bf16.mxu0 0
    %1439 = vmatpush2.bf16.xpose.msra.mxu0 0
    %1440 = vmatprep.subr.bf16.mxu0 0
    %1441 = vmatpush2.bf16.xpose.msra.mxu0 0
    %1442 = vmatprep.subr.bf16.mxu0 0
    %1443 = vmatpush2.bf16.xpose.msra.mxu0 0
    %1444 = vmatprep.subr.bf16.mxu0 0
    %1445 = vmatpush2.bf16.xpose.msra.mxu0 0
    %1446 = vmatprep.mubr.bf16.mxu0 0
    %1447 = vmatmul.mubr.bf16.gmra.mxu0 %v1406
    %v1448 = vpop.f32.mrf.mxu0
    %v1449 = vadd.f32 %v1404, %v1448
    %v1450 = vpop.f32.mrf.mxu0
    %v1451 = vpop.f32.mrf.mxu0
    %v1452 = vpop.f32.mrf.mxu0
    %1453 = vdwg.mxu0
    %1454 = vst.msk [vmem:[#allocation22] sm:$0x1] %vm1044, %v1449
    // Predicated region
    $region110: #{tpu_custom_call.1} parent=1 // pred_check
      _
    $region111: #{tpu_custom_call.1} parent=1 // pred_check_branch
      %1456 = sbr.rel (0) target = $region113
    $region112: #{tpu_custom_call.1} parent=1 // pred_region
      %s1458 = ssub.s32 16, 16
      %1459 = vsyncadd [#allocation8], %s1458
      %s1461 = sshll.u32 [#allocation22], 4
      %s1462 = int_to_ptr.vmem [resolvable:$true] %s1461
      %1464 = dma.vmem_to_hbm [thread:$0]  %s1462, 16, %s18, [#allocation8]
    $region113: #{tpu_custom_call.1} parent=1 // pred_fallthru
      _
    // Predicated region
    $region114: #{tpu_custom_call.1} parent=1 // pred_check
      _
    $region115: #{tpu_custom_call.1} parent=1 // pred_check_branch
      %1466 = sbr.rel (0) target = $region117
    $region116: #{tpu_custom_call.1} parent=1 // pred_region
      %1467 = dma.done [#allocation8], 16
    $region117: #{tpu_custom_call.1} parent=1 // pred_fallthru
      _
    %1468 = vsyncpa [#allocation7], 1
    %1469 = vsyncpa [#allocation14], 1
    %1470 = vsyncpa [#allocation17], 1
    %1471 = vsyncpa [#allocation20], 1
    %1472 = vsyncpa [#allocation8], 1
    %1473 = vsyncpa [#allocation9], 1
    %1474 = vsyncpa [#allocation11], 1

</llo_original>
